<compile_context>
chip_gen: v7x
topology: tpu7x:2x2x1
jax: 0.10.0
libtpu: 0.0.40
codegen_flags: <defaults>
</compile_context>

<pallas_src>
import jax
import jax.numpy as jnp
from jax.experimental import pallas as pl
from jax.experimental.pallas import tpu as pltpu


def _round_up(n, m):
    return ((n + m - 1) // m) * m


def compsae_kernel(x_ref, wef_ref, bef_ref, wec_ref, bec_ref,
                   wcb_ref, bcb_ref, wdec_ref, wres_ref, bdec_ref, out_ref):
    """One (block_b, d_in) batch tile of the fused CompSAE forward."""
    x = x_ref[...]                                        # (TB, d_in), compute dtype

    # f_acts = relu(x @ W_enc_f + b_enc_f')  -- b_dec subtraction folded into bias.
    f = jnp.maximum(
        jnp.dot(x, wef_ref[...], preferred_element_type=jnp.float32)
        + bef_ref[...], 0.0)                              # f32 (TB, d_f)

    # Cast once; reused for the c-encoder matmul AND the residual decode dot.
    f_c = f.astype(wec_ref.dtype)

    # c_acts = relu(f_acts @ W_enc_c + b_enc_c)
    c = jnp.maximum(
        jnp.dot(f_c, wec_ref[...], preferred_element_type=jnp.float32)
        + bec_ref[...], 0.0)                              # f32 (TB, d_c)

    # MHA over a length-1 sequence (softmax over one key == 1) folded with the
    # bottleneck into one matmul; topk(k == dict_size) + scatter is the
    # identity, so bn is already the sparse code.
    bn = jnp.maximum(
        jnp.dot(c.astype(wcb_ref.dtype), wcb_ref[...],
                preferred_element_type=jnp.float32)
        + bcb_ref[...], 0.0)                              # f32 (TB, k_pad)

    # decode: two dots summed into one f32 accumulator (no lane-axis concat copy).
    out = (jnp.dot(bn.astype(wdec_ref.dtype), wdec_ref[...],
                   preferred_element_type=jnp.float32)
           + jnp.dot(f_c, wres_ref[...], preferred_element_type=jnp.float32)
           + bdec_ref[...])
    out_ref[...] = out.astype(out_ref.dtype)


def _fold_params(params, compute_dtype):
    """Algebraic folds + output-side lane padding, done once in the wrapper."""
    f32 = jnp.float32
    W_enc_f = params["W_enc_f"].astype(f32)
    b_enc_f = params["b_enc_f"].astype(f32).reshape(1, -1)
    W_enc_c = params["W_enc_c"].astype(f32)
    b_enc_c = params["b_enc_c"].astype(f32).reshape(1, -1)
    W_v = params["W_v"].astype(f32)
    b_v = params["b_v"].astype(f32).reshape(1, -1)
    W_o = params["W_o"].astype(f32)
    b_o = params["b_o"].astype(f32).reshape(1, -1)
    W_bn = params["W_bn"].astype(f32)
    W_dec = params["W_dec"].astype(f32)
    W_res = params["W_res"].astype(f32)
    b_dec = params["b_dec"].astype(f32).reshape(1, -1)

    d_in, d_f = W_enc_f.shape
    d_c = W_enc_c.shape[1]
    k = W_bn.shape[1]
    k_pad = max(_round_up(k, 128), 128)
    d_out_pad = max(_round_up(d_in, 128), 128)   # lane-dense (unmasked) stores

    # Fold the input-mean subtraction into the encoder bias.
    b_enc_f_fold = b_enc_f - b_dec @ W_enc_f
    # Fold the seq_len==1 attention (value + out projections) with the bottleneck.
    W_cb = W_v @ W_o @ W_bn
    b_cb = (b_v @ W_o + b_o) @ W_bn

    # Pad only k and the OUTPUT feature dim to 128 lanes.  The input side
    # (x, W_enc_f) stays unpadded: the MXU handles a short contraction dim and
    # a (block_b, d_in) input block is legal since d_in is the full array dim.
    W_cb_p = jnp.zeros((d_c, k_pad), f32).at[:, :k].set(W_cb)
    b_cb_p = jnp.zeros((1, k_pad), f32).at[:, :k].set(b_cb)
    if d_out_pad == d_in:
        W_dec_p = jnp.zeros((k_pad, d_in), f32).at[:k, :].set(W_dec)
        W_res_p = W_res
        b_dec_p = b_dec
    else:
        W_dec_p = jnp.zeros((k_pad, d_out_pad), f32).at[:k, :d_in].set(W_dec)
        W_res_p = jnp.zeros((d_f, d_out_pad), f32).at[:, :d_in].set(W_res)
        b_dec_p = jnp.zeros((1, d_out_pad), f32).at[:, :d_in].set(b_dec)

    weights = (
        W_enc_f.astype(compute_dtype),   # MXU operands in compute dtype (bf16/f32)
        b_enc_f_fold,                    # biases stay f32 (f32 acc, v5e-safe VPU)
        W_enc_c.astype(compute_dtype),
        b_enc_c,
        W_cb_p.astype(compute_dtype),
        b_cb_p,
        W_dec_p.astype(compute_dtype),
        W_res_p.astype(compute_dtype),
        b_dec_p,
    )
    return weights, (d_in, d_f, d_c, k_pad, d_out_pad)


def _pick_batch_tiling(B, block_b):
    """Pick block_b (multiple of 8) and an EVEN grid step count >= 2.

    v7x has 2 TensorCores and the 'parallel' batch axis is what shards the grid
    across them, so a 1-step (or odd) grid leaves a core idle. v5e/v6e (1 TC)
    are unaffected by the even-step requirement."""
    block_b = max(8, min(int(block_b), _round_up(B, 8)))
    n_steps = max(2, -(-B // block_b))
    if n_steps % 2:
        n_steps += 1
    block_b = min(block_b, _round_up(-(-B // n_steps), 8))
    return block_b, n_steps


def _vmem_ceiling_bytes():
    """Per-generation scoped-VMEM ceiling (~48 MiB of v7x's 64 MiB per TC,
    ~96 MiB of v5e/v6e's 128 MiB)."""
    try:
        cap = pltpu.get_tpu_info().vmem_capacity_bytes
    except Exception:
        cap = 64 * 1024 * 1024
    return int(cap * 3 // 4)


def compsae_forward(x, params, *, block_b=256, compute_dtype=jnp.bfloat16,
                    out_dtype=jnp.float32):
    """Fused CompSAE forward.

    block_b is the primary sweep knob (256-512 recommended; per-grid-step
    overhead ~0.35us, larger tiles push the mem-bound x/out traffic toward the
    HBM roofline).  compute_dtype sets the MXU operand dtype (bf16 default:
    native on all gens, halves weight/x bytes); accumulation, biases and ReLU
    stay f32.  out_dtype can be set to bf16 to halve the output write stream.
    """
    B, d_in = x.shape
    weights, (d_in_chk, d_f, d_c, k_pad, d_out_pad) = _fold_params(
        params, compute_dtype)
    assert d_in_chk == d_in

    block_b, n_steps = _pick_batch_tiling(B, block_b)
    B_pad = block_b * n_steps

    # Build the kernel input directly in the compute dtype (single HBM pass);
    # no lane padding of x, only batch padding when the tiling needs it.
    x_c = x.astype(compute_dtype)
    if B_pad != B:
        x_c = jnp.zeros((B_pad, d_in), compute_dtype).at[:B, :].set(x_c)

    in_spec = pl.BlockSpec((block_b, d_in), lambda i: (i, 0))
    out_spec = pl.BlockSpec((block_b, d_out_pad), lambda i: (i, 0))
    # Grid-invariant weights: whole array, single VMEM buffer (no double buffering).
    w_spec = pl.BlockSpec(memory_space=pltpu.MemorySpace.VMEM)

    in_itemsize = jnp.dtype(compute_dtype).itemsize
    out_itemsize = jnp.dtype(out_dtype).itemsize
    weight_bytes = sum(int(w.size) * w.dtype.itemsize for w in weights)
    flops = 2 * B_pad * (d_in * d_f + d_f * d_c + d_c * k_pad
                         + k_pad * d_out_pad + d_f * d_out_pad)
    bytes_accessed = (B_pad * d_in * in_itemsize
                      + B_pad * d_out_pad * out_itemsize + weight_bytes)

    # VMEM budget: single-buffered weights + double-buffered x/out tiles +
    # f32 intermediate activation tiles, with 2x headroom, capped per generation.
    io_bytes = 2 * block_b * (d_in * in_itemsize + d_out_pad * out_itemsize)
    act_bytes = block_b * (2 * d_f + d_c + k_pad + d_out_pad) * 4
    vmem_limit = int(min(_vmem_ceiling_bytes(),
                         max(16 * 1024 * 1024,
                             2 * (weight_bytes + io_bytes + act_bytes))))
    # TODO(synk): for production SAE sizes (d_f ~ 16k-24k) W_enc_f / W_res cannot
    # stay fully VMEM-resident (esp. v7x, 64 MiB/TC); add an "arbitrary" d_f grid
    # axis, block W_enc_f / W_enc_c / W_res along d_f, keep the f tile in VMEM
    # scratch, and accumulate the W_res contribution per d_f block under pl.when.

    out = pl.pallas_call(
        compsae_kernel,
        out_shape=jax.ShapeDtypeStruct((B_pad, d_out_pad), out_dtype),
        grid_spec=pltpu.PrefetchScalarGridSpec(
            num_scalar_prefetch=0,
            grid=(n_steps,),                 # even batch grid -> both TCs on v7x
            in_specs=[in_spec] + [w_spec] * len(weights),
            out_specs=out_spec,
        ),
        compiler_params=pltpu.CompilerParams(
            dimension_semantics=("parallel",),
            vmem_limit_bytes=vmem_limit),
        cost_estimate=pl.CostEstimate(flops=flops, transcendentals=0,
                                      bytes_accessed=bytes_accessed),
    )(x_c, *weights)

    if B_pad != B or d_out_pad != d_in:
        out = out[:B, :d_in]
    return out


def reference_forward(x, p):
    """Literal (unfused) JAX transcription of the PyTorch forward."""
    f = jnp.maximum((x - p["b_dec"]) @ p["W_enc_f"] + p["b_enc_f"], 0.0)
    c = jnp.maximum(f @ p["W_enc_c"] + p["b_enc_c"], 0.0)
    v = c @ p["W_v"] + p["b_v"]
    attn = v @ p["W_o"] + p["b_o"]
    bn = jnp.maximum(attn @ p["W_bn"], 0.0)
    return bn @ p["W_dec"] + f @ p["W_res"] + p["b_dec"]


if __name__ == "__main__":
    # Shapes consistent with the module defaults (d_f=256, d_c=128, k=32); batch
    # big enough that the default block_b=256 gives a 2-step (even) grid.
    B, d_in, d_f, d_c, bottleneck_k = 512, 64, 256, 128, 32

    key = jax.random.PRNGKey(0)
    keys = jax.random.split(key, 14)

    def init(k, shape, scale=0.02):
        return scale * jax.random.normal(k, shape, dtype=jnp.float32)

    params = {
        "b_dec":   init(keys[0], (1, d_in)),
        "W_enc_f": init(keys[1], (d_in, d_f)),
        "b_enc_f": init(keys[2], (1, d_f)),
        "W_enc_c": init(keys[3], (d_f, d_c)),
        "b_enc_c": init(keys[4], (1, d_c)),
        # MHA value/out projections, stored pre-transposed as [in, out].
        "W_v":     init(keys[5], (d_c, d_c)),
        "b_v":     init(keys[6], (1, d_c)),
        "W_o":     init(keys[7], (d_c, d_c)),
        "b_o":     init(keys[8], (1, d_c)),
        "W_bn":    init(keys[9], (d_c, bottleneck_k)),
        "W_dec":   init(keys[10], (bottleneck_k, d_in)),
        "W_res":   init(keys[11], (d_f, d_in)),
    }
    # TODO(synk): Q/K projections of nn.MultiheadAttention are mathematically
    # inert for seq_len == 1 (softmax of a singleton == 1) and are omitted;
    # attention dropout is assumed 0 (eval mode).

    x = jax.random.normal(keys[12], (B, d_in), dtype=jnp.float32)

    ref = reference_forward(x, params)

    # Default path: bf16 MXU operands, f32 accumulate/bias/ReLU in-kernel.
    out = jax.block_until_ready(compsae_forward(x, params))
    assert out.shape == (B, d_in)
    assert jnp.allclose(out, ref, atol=1e-2, rtol=5e-2)

    # f32 path: folded weights are a pure reassociation, tight tolerance.
    out_f32 = jax.block_until_ready(
        compsae_forward(x, params, block_b=512, compute_dtype=jnp.float32))
    assert out_f32.shape == (B, d_in)
    assert jnp.allclose(out_f32, ref, atol=1e-4, rtol=1e-4)

    print("KERNEL_OK")
</pallas_src>

<mosaic_0001>
module attributes {stable_mosaic.version = 11 : i64} {
  func.func @compsae_kernel(%arg0: i32, %arg1: memref<256x64xbf16, #tpu.memory_space<vmem>>, %arg2: memref<64x256xbf16, #tpu.memory_space<vmem>>, %arg3: memref<1x256xf32, #tpu.memory_space<vmem>>, %arg4: memref<256x128xbf16, #tpu.memory_space<vmem>>, %arg5: memref<1x128xf32, #tpu.memory_space<vmem>>, %arg6: memref<128x128xbf16, #tpu.memory_space<vmem>>, %arg7: memref<1x128xf32, #tpu.memory_space<vmem>>, %arg8: memref<128x128xbf16, #tpu.memory_space<vmem>>, %arg9: memref<256x128xbf16, #tpu.memory_space<vmem>>, %arg10: memref<1x128xf32, #tpu.memory_space<vmem>>, %arg11: memref<256x128xf32, #tpu.memory_space<vmem>>) attributes {dimension_semantics = [#tpu.dimension_semantics<parallel>], iteration_bounds = array<i64: 2>, scalar_prefetch = 0 : i64, scratch_operands = 0 : i64, tpu.core_type = #tpu.core_type<tc>, window_params = [{transform_indices = @transform_0, window_bounds = array<i64: 256, 64>}, {pipeline_mode = #tpu.pipeline_mode<synchronous>, transform_indices = @transform_1, window_bounds = array<i64: 64, 256>}, {pipeline_mode = #tpu.pipeline_mode<synchronous>, transform_indices = @transform_2, window_bounds = array<i64: 1, 256>}, {pipeline_mode = #tpu.pipeline_mode<synchronous>, transform_indices = @transform_3, window_bounds = array<i64: 256, 128>}, {pipeline_mode = #tpu.pipeline_mode<synchronous>, transform_indices = @transform_4, window_bounds = array<i64: 1, 128>}, {pipeline_mode = #tpu.pipeline_mode<synchronous>, transform_indices = @transform_5, window_bounds = array<i64: 128, 128>}, {pipeline_mode = #tpu.pipeline_mode<synchronous>, transform_indices = @transform_6, window_bounds = array<i64: 1, 128>}, {pipeline_mode = #tpu.pipeline_mode<synchronous>, transform_indices = @transform_7, window_bounds = array<i64: 128, 128>}, {pipeline_mode = #tpu.pipeline_mode<synchronous>, transform_indices = @transform_8, window_bounds = array<i64: 256, 128>}, {pipeline_mode = #tpu.pipeline_mode<synchronous>, transform_indices = @transform_9, window_bounds = array<i64: 1, 128>}, {transform_indices = @transform_10, window_bounds = array<i64: 256, 128>}]} {
    %c0 = arith.constant 0 : index
    %c0_0 = arith.constant 0 : index
    %0 = vector.load %arg1[%c0, %c0_0] : memref<256x64xbf16, #tpu.memory_space<vmem>>, vector<256x64xbf16>
    %c0_1 = arith.constant 0 : index
    %c0_2 = arith.constant 0 : index
    %1 = vector.load %arg2[%c0_1, %c0_2] : memref<64x256xbf16, #tpu.memory_space<vmem>>, vector<64x256xbf16>
    %cst = arith.constant dense<0.000000e+00> : vector<256x256xf32>
    %2 = tpu.matmul %0, %1, %cst {dimension_numbers = #tpu.dot_dimension_numbers<[1], [0], [0], [1], [0, 0, 1, 1], [], []>} : vector<256x64xbf16>, vector<64x256xbf16>, vector<256x256xf32> -> vector<256x256xf32>
    %c0_3 = arith.constant 0 : index
    %c0_4 = arith.constant 0 : index
    %3 = vector.load %arg3[%c0_3, %c0_4] : memref<1x256xf32, #tpu.memory_space<vmem>>, vector<1x256xf32>
    %4 = vector.broadcast %3 : vector<1x256xf32> to vector<256x256xf32>
    %5 = arith.addf %2, %4 : vector<256x256xf32>
    %cst_5 = arith.constant 0.000000e+00 : f32
    %6 = vector.broadcast %cst_5 : f32 to vector<256x256xf32>
    %7 = arith.maximumf %5, %6 : vector<256x256xf32>
    %8 = arith.truncf %7 : vector<256x256xf32> to vector<256x256xbf16>
    %c0_6 = arith.constant 0 : index
    %c0_7 = arith.constant 0 : index
    %9 = vector.load %arg4[%c0_6, %c0_7] : memref<256x128xbf16, #tpu.memory_space<vmem>>, vector<256x128xbf16>
    %cst_8 = arith.constant dense<0.000000e+00> : vector<256x128xf32>
    %10 = tpu.matmul %8, %9, %cst_8 {dimension_numbers = #tpu.dot_dimension_numbers<[1], [0], [0], [1], [0, 0, 1, 1], [], []>} : vector<256x256xbf16>, vector<256x128xbf16>, vector<256x128xf32> -> vector<256x128xf32>
    %c0_9 = arith.constant 0 : index
    %c0_10 = arith.constant 0 : index
    %11 = vector.load %arg5[%c0_9, %c0_10] : memref<1x128xf32, #tpu.memory_space<vmem>>, vector<1x128xf32>
    %12 = vector.broadcast %11 : vector<1x128xf32> to vector<256x128xf32>
    %13 = arith.addf %10, %12 : vector<256x128xf32>
    %cst_11 = arith.constant 0.000000e+00 : f32
    %14 = vector.broadcast %cst_11 : f32 to vector<256x128xf32>
    %15 = arith.maximumf %13, %14 : vector<256x128xf32>
    %16 = arith.truncf %15 : vector<256x128xf32> to vector<256x128xbf16>
    %c0_12 = arith.constant 0 : index
    %c0_13 = arith.constant 0 : index
    %17 = vector.load %arg6[%c0_12, %c0_13] : memref<128x128xbf16, #tpu.memory_space<vmem>>, vector<128x128xbf16>
    %cst_14 = arith.constant dense<0.000000e+00> : vector<256x128xf32>
    %18 = tpu.matmul %16, %17, %cst_14 {dimension_numbers = #tpu.dot_dimension_numbers<[1], [0], [0], [1], [0, 0, 1, 1], [], []>} : vector<256x128xbf16>, vector<128x128xbf16>, vector<256x128xf32> -> vector<256x128xf32>
    %c0_15 = arith.constant 0 : index
    %c0_16 = arith.constant 0 : index
    %19 = vector.load %arg7[%c0_15, %c0_16] : memref<1x128xf32, #tpu.memory_space<vmem>>, vector<1x128xf32>
    %20 = vector.broadcast %19 : vector<1x128xf32> to vector<256x128xf32>
    %21 = arith.addf %18, %20 : vector<256x128xf32>
    %cst_17 = arith.constant 0.000000e+00 : f32
    %22 = vector.broadcast %cst_17 : f32 to vector<256x128xf32>
    %23 = arith.maximumf %21, %22 : vector<256x128xf32>
    %24 = arith.truncf %23 : vector<256x128xf32> to vector<256x128xbf16>
    %c0_18 = arith.constant 0 : index
    %c0_19 = arith.constant 0 : index
    %25 = vector.load %arg8[%c0_18, %c0_19] : memref<128x128xbf16, #tpu.memory_space<vmem>>, vector<128x128xbf16>
    %cst_20 = arith.constant dense<0.000000e+00> : vector<256x128xf32>
    %26 = tpu.matmul %24, %25, %cst_20 {dimension_numbers = #tpu.dot_dimension_numbers<[1], [0], [0], [1], [0, 0, 1, 1], [], []>} : vector<256x128xbf16>, vector<128x128xbf16>, vector<256x128xf32> -> vector<256x128xf32>
    %c0_21 = arith.constant 0 : index
    %c0_22 = arith.constant 0 : index
    %27 = vector.load %arg9[%c0_21, %c0_22] : memref<256x128xbf16, #tpu.memory_space<vmem>>, vector<256x128xbf16>
    %cst_23 = arith.constant dense<0.000000e+00> : vector<256x128xf32>
    %28 = tpu.matmul %8, %27, %cst_23 {dimension_numbers = #tpu.dot_dimension_numbers<[1], [0], [0], [1], [0, 0, 1, 1], [], []>} : vector<256x256xbf16>, vector<256x128xbf16>, vector<256x128xf32> -> vector<256x128xf32>
    %29 = arith.addf %26, %28 : vector<256x128xf32>
    %c0_24 = arith.constant 0 : index
    %c0_25 = arith.constant 0 : index
    %30 = vector.load %arg10[%c0_24, %c0_25] : memref<1x128xf32, #tpu.memory_space<vmem>>, vector<1x128xf32>
    %31 = vector.broadcast %30 : vector<1x128xf32> to vector<256x128xf32>
    %32 = arith.addf %29, %31 : vector<256x128xf32>
    %c0_26 = arith.constant 0 : index
    %c0_27 = arith.constant 0 : index
    %33 = vector.load %arg11[%c0_26, %c0_27] : memref<256x128xf32, #tpu.memory_space<vmem>>, vector<256x128xf32>
    tpu.vector_store %arg11[%c0_26, %c0_27], %32 {strides = array<i32>} : memref<256x128xf32, #tpu.memory_space<vmem>>, vector<256x128xf32>,
    return
  }
  func.func @transform_0(%arg0: i32) -> (i32, i32) {
    %c0_i32 = arith.constant 0 : i32
    %c0_i32_0 = arith.constant 0 : i32
    return %arg0, %c0_i32 : i32, i32
  }
  func.func @transform_1(%arg0: i32) -> (i32, i32) {
    %c0_i32 = arith.constant 0 : i32
    %c0_i32_0 = arith.constant 0 : i32
    %c0_i32_1 = arith.constant 0 : i32
    return %c0_i32, %c0_i32_0 : i32, i32
  }
  func.func @transform_2(%arg0: i32) -> (i32, i32) {
    %c0_i32 = arith.constant 0 : i32
    %c0_i32_0 = arith.constant 0 : i32
    %c0_i32_1 = arith.constant 0 : i32
    return %c0_i32, %c0_i32_0 : i32, i32
  }
  func.func @transform_3(%arg0: i32) -> (i32, i32) {
    %c0_i32 = arith.constant 0 : i32
    %c0_i32_0 = arith.constant 0 : i32
    %c0_i32_1 = arith.constant 0 : i32
    return %c0_i32, %c0_i32_0 : i32, i32
  }
  func.func @transform_4(%arg0: i32) -> (i32, i32) {
    %c0_i32 = arith.constant 0 : i32
    %c0_i32_0 = arith.constant 0 : i32
    %c0_i32_1 = arith.constant 0 : i32
    return %c0_i32, %c0_i32_0 : i32, i32
  }
  func.func @transform_5(%arg0: i32) -> (i32, i32) {
    %c0_i32 = arith.constant 0 : i32
    %c0_i32_0 = arith.constant 0 : i32
    %c0_i32_1 = arith.constant 0 : i32
    return %c0_i32, %c0_i32_0 : i32, i32
  }
  func.func @transform_6(%arg0: i32) -> (i32, i32) {
    %c0_i32 = arith.constant 0 : i32
    %c0_i32_0 = arith.constant 0 : i32
    %c0_i32_1 = arith.constant 0 : i32
    return %c0_i32, %c0_i32_0 : i32, i32
  }
  func.func @transform_7(%arg0: i32) -> (i32, i32) {
    %c0_i32 = arith.constant 0 : i32
    %c0_i32_0 = arith.constant 0 : i32
    %c0_i32_1 = arith.constant 0 : i32
    return %c0_i32, %c0_i32_0 : i32, i32
  }
  func.func @transform_8(%arg0: i32) -> (i32, i32) {
    %c0_i32 = arith.constant 0 : i32
    %c0_i32_0 = arith.constant 0 : i32
    %c0_i32_1 = arith.constant 0 : i32
    return %c0_i32, %c0_i32_0 : i32, i32
  }
  func.func @transform_9(%arg0: i32) -> (i32, i32) {
    %c0_i32 = arith.constant 0 : i32
    %c0_i32_0 = arith.constant 0 : i32
    %c0_i32_1 = arith.constant 0 : i32
    return %c0_i32, %c0_i32_0 : i32, i32
  }
  func.func @transform_10(%arg0: i32) -> (i32, i32) {
    %c0_i32 = arith.constant 0 : i32
    %c0_i32_0 = arith.constant 0 : i32
    return %arg0, %c0_i32 : i32, i32
  }
}

</mosaic_0001>

<llo_original>
// kernel: tpu_custom_call.1
$region0: #{tpu_custom_call.1}
  #allocation0 [shape = 'u32[]', space=smem, size = 0x4, offset = 0x4, fixed_abs, tag = 'smem constant byte address 0x4 - core index']
  #allocation1 [shape = 'u32[144,128]{1,0:T(1,128)}', space=vmem, size = 0x12000, scoped, tag = 'internal scratch']
  %s0 = inlined_call_operand.vmem [shape: bf16[512,64], index: 0, kind: input, shape index: {}]
  %s1 = inlined_call_operand.vmem [shape: bf16[64,256], index: 1, kind: input, shape index: {}]
  %s2 = inlined_call_operand.vmem [shape: f32[1,256], index: 2, kind: input, shape index: {}]
  %s3 = inlined_call_operand.vmem [shape: bf16[256,128], index: 3, kind: input, shape index: {}]
  %s4 = inlined_call_operand.vmem [shape: f32[1,128], index: 4, kind: input, shape index: {}]
  %s5 = inlined_call_operand.vmem [shape: bf16[128,128], index: 5, kind: input, shape index: {}]
  %s6 = inlined_call_operand.vmem [shape: f32[1,128], index: 6, kind: input, shape index: {}]
  %s7 = inlined_call_operand.hbm [shape: bf16[128,128], index: 7, kind: input, shape index: {}]
  %s8 = inlined_call_operand.vmem [shape: bf16[256,128], index: 8, kind: input, shape index: {}]
  %s9 = inlined_call_operand.vmem [shape: f32[1,128], index: 9, kind: input, shape index: {}]
  %s10 = inlined_call_operand.hbm [shape: f32[512,128], index: 10, kind: output, shape index: {}]
  %s11 = sld [smem:[#allocation0]]
  $region77: #{tpu_custom_call.1} parent=0
    _
  %s13 = ssub.s32 1, %s11
  %s14 = scalar_select 0, %s13, %s11
  $region1: #{tpu_custom_call.1} parent=0
    #allocation2 [shape = 'u8[32768]{0}', space=vmem, size = 0x8000, scoped, tag = 'input window, operand 7, single buffered']
    #allocation3 [shape = 's32[2]{0}', space=sflag, size = 0x8, scoped, tag = 'scoped memory for tpu_custom_call.1']
    #allocation4 [shape = 's32[2]{0}', space=sflag, size = 0x8, scoped, tag = 'scoped memory for tpu_custom_call.1']
    #allocation5 [shape = 'u8[262144]{0}', space=vmem, size = 0x40000, scoped, tag = 'output window, operand 0']
    %15 = vsyncpa [#allocation3], 0
    %16 = vsyncpa [#allocation4], 0
    %s17 = scalar_lea.sflag [#allocation4], 1
    %18 = vsyncpa %s17, 0
    loop: start=0, step=1, limit=4
    $region2: #{tpu_custom_call.1} parent=1 // loop_pre_header
      _
    $region3: #{tpu_custom_call.1} parent=1 // loop_header
      %s20 = sphi 0, %s24
      %p21 = scmp.ge.s32.totalorder %s20, 4
      %s30 = sphi 0, %s32
      %s33 = sphi 0, %s30
      %s34 = sphi 0, %s33
      %s50 = sphi 0, %s34
      %s54 = sphi 0, %s54
      %s56 = sphi 0, %s54
      %s57 = sphi 0, %s56
      %s71 = sphi 0, %s57
      %s75 = sphi 0, %s75
      %s77 = sphi 0, %s75
      %s78 = sphi 0, %s77
      %s92 = sphi 0, %s78
      %s96 = sphi 0, %s96
      %s98 = sphi 0, %s96
      %s99 = sphi 0, %s98
      %s113 = sphi 0, %s99
      %s117 = sphi 0, %s117
      %s119 = sphi 0, %s117
      %s120 = sphi 0, %s119
      %s134 = sphi 0, %s120
      %s138 = sphi 0, %s138
      %s140 = sphi 0, %s138
      %s141 = sphi 0, %s140
      %s155 = sphi 0, %s141
      %s159 = sphi 0, %s159
      %s161 = sphi 0, %s159
      %s162 = sphi 0, %s161
      %s176 = sphi 0, %s162
      %s180 = sphi 0, %s180
      %s182 = sphi 0, %s180
      %s183 = sphi 0, %s182
      %s197 = sphi 0, %s183
      %s201 = sphi 0, %s201
      %s203 = sphi 0, %s201
      %s204 = sphi 0, %s203
      %s218 = sphi 0, %s204
      %s222 = sphi 0, %s222
      %s224 = sphi 0, %s222
      %s225 = sphi 0, %s224
      %s239 = sphi 0, %s225
      %s245 = sphi 0, %s247
      %s248 = sphi 0, %s245
      %s249 = sphi 0, %s248
      %s265 = sphi 0, %s249
    $region4: #{tpu_custom_call.1} parent=1 // loop_header_branch
      %23 = sbr.rel (%p21) target = $region8
    $region5: #{tpu_custom_call.1} parent=1 // loop_body
      %s25 = ssub.s32 %s20, 1
      %s26 = ssub.s32 %s20, 2
      %s27 = sadd.s32 %s20, 1
      %s28 = ssub.s32 %s20, %s27
      %p29 = scmp.eq.s32.totalorder %s28, 0
      %s31 = sadd.s32 %s30, 1
      %s32 = scalar_select %p29, %s30, %s31
      %p35 = pneg %p29
      %p36 = scmp.eq.s32.totalorder %s20, 1
      %p37 = por %p35, %p36
      %p38 = scmp.ne.s32.totalorder %s30, %s33
      %p39 = scmp.eq.s32.totalorder %s20, 0
      %p40 = por %p38, %p39
      %p41 = scmp.ne.s32.totalorder %s30, %s33
      %p42 = scmp.eq.s32.totalorder %s25, 1
      %p43 = por %p41, %p42
      %p44 = scmp.ne.s32.totalorder %s33, %s34
      %p45 = scmp.eq.s32.totalorder %s25, 0
      %p46 = por %p44, %p45
      %p47 = scmp.ne.s32.totalorder %s33, %s34
      %p48 = scmp.eq.s32.totalorder %s26, 1
      %p49 = por %p47, %p48
      %p51 = scmp.ne.s32.totalorder %s34, %s50
      %p52 = scmp.eq.s32.totalorder %s26, 0
      %p53 = por %p51, %p52
      %s55 = sadd.s32 %s54, 1
      %p58 = scmp.eq.s32.totalorder %s20, 1
      %p59 = scmp.ne.s32.totalorder %s54, %s56
      %p60 = scmp.eq.s32.totalorder %s20, 0
      %p61 = por %p59, %p60
      %p62 = scmp.ne.s32.totalorder %s54, %s56
      %p63 = scmp.eq.s32.totalorder %s25, 1
      %p64 = por %p62, %p63
      %p65 = scmp.ne.s32.totalorder %s56, %s57
      %p66 = scmp.eq.s32.totalorder %s25, 0
      %p67 = por %p65, %p66
      %p68 = scmp.ne.s32.totalorder %s56, %s57
      %p69 = scmp.eq.s32.totalorder %s26, 1
      %p70 = por %p68, %p69
      %p72 = scmp.ne.s32.totalorder %s57, %s71
      %p73 = scmp.eq.s32.totalorder %s26, 0
      %p74 = por %p72, %p73
      %s76 = sadd.s32 %s75, 1
      %p79 = scmp.eq.s32.totalorder %s20, 1
      %p80 = scmp.ne.s32.totalorder %s75, %s77
      %p81 = scmp.eq.s32.totalorder %s20, 0
      %p82 = por %p80, %p81
      %p83 = scmp.ne.s32.totalorder %s75, %s77
      %p84 = scmp.eq.s32.totalorder %s25, 1
      %p85 = por %p83, %p84
      %p86 = scmp.ne.s32.totalorder %s77, %s78
      %p87 = scmp.eq.s32.totalorder %s25, 0
      %p88 = por %p86, %p87
      %p89 = scmp.ne.s32.totalorder %s77, %s78
      %p90 = scmp.eq.s32.totalorder %s26, 1
      %p91 = por %p89, %p90
      %p93 = scmp.ne.s32.totalorder %s78, %s92
      %p94 = scmp.eq.s32.totalorder %s26, 0
      %p95 = por %p93, %p94
      %s97 = sadd.s32 %s96, 1
      %p100 = scmp.eq.s32.totalorder %s20, 1
      %p101 = scmp.ne.s32.totalorder %s96, %s98
      %p102 = scmp.eq.s32.totalorder %s20, 0
      %p103 = por %p101, %p102
      %p104 = scmp.ne.s32.totalorder %s96, %s98
      %p105 = scmp.eq.s32.totalorder %s25, 1
      %p106 = por %p104, %p105
      %p107 = scmp.ne.s32.totalorder %s98, %s99
      %p108 = scmp.eq.s32.totalorder %s25, 0
      %p109 = por %p107, %p108
      %p110 = scmp.ne.s32.totalorder %s98, %s99
      %p111 = scmp.eq.s32.totalorder %s26, 1
      %p112 = por %p110, %p111
      %p114 = scmp.ne.s32.totalorder %s99, %s113
      %p115 = scmp.eq.s32.totalorder %s26, 0
      %p116 = por %p114, %p115
      %s118 = sadd.s32 %s117, 1
      %p121 = scmp.eq.s32.totalorder %s20, 1
      %p122 = scmp.ne.s32.totalorder %s117, %s119
      %p123 = scmp.eq.s32.totalorder %s20, 0
      %p124 = por %p122, %p123
      %p125 = scmp.ne.s32.totalorder %s117, %s119
      %p126 = scmp.eq.s32.totalorder %s25, 1
      %p127 = por %p125, %p126
      %p128 = scmp.ne.s32.totalorder %s119, %s120
      %p129 = scmp.eq.s32.totalorder %s25, 0
      %p130 = por %p128, %p129
      %p131 = scmp.ne.s32.totalorder %s119, %s120
      %p132 = scmp.eq.s32.totalorder %s26, 1
      %p133 = por %p131, %p132
      %p135 = scmp.ne.s32.totalorder %s120, %s134
      %p136 = scmp.eq.s32.totalorder %s26, 0
      %p137 = por %p135, %p136
      %s139 = sadd.s32 %s138, 1
      %p142 = scmp.eq.s32.totalorder %s20, 1
      %p143 = scmp.ne.s32.totalorder %s138, %s140
      %p144 = scmp.eq.s32.totalorder %s20, 0
      %p145 = por %p143, %p144
      %p146 = scmp.ne.s32.totalorder %s138, %s140
      %p147 = scmp.eq.s32.totalorder %s25, 1
      %p148 = por %p146, %p147
      %p149 = scmp.ne.s32.totalorder %s140, %s141
      %p150 = scmp.eq.s32.totalorder %s25, 0
      %p151 = por %p149, %p150
      %p152 = scmp.ne.s32.totalorder %s140, %s141
      %p153 = scmp.eq.s32.totalorder %s26, 1
      %p154 = por %p152, %p153
      %p156 = scmp.ne.s32.totalorder %s141, %s155
      %p157 = scmp.eq.s32.totalorder %s26, 0
      %p158 = por %p156, %p157
      %s160 = sadd.s32 %s159, 1
      %p163 = scmp.eq.s32.totalorder %s20, 1
      %p164 = scmp.ne.s32.totalorder %s159, %s161
      %p165 = scmp.eq.s32.totalorder %s20, 0
      %p166 = por %p164, %p165
      %p167 = scmp.ne.s32.totalorder %s159, %s161
      %p168 = scmp.eq.s32.totalorder %s25, 1
      %p169 = por %p167, %p168
      %p170 = scmp.ne.s32.totalorder %s161, %s162
      %p171 = scmp.eq.s32.totalorder %s25, 0
      %p172 = por %p170, %p171
      %p173 = scmp.ne.s32.totalorder %s161, %s162
      %p174 = scmp.eq.s32.totalorder %s26, 1
      %p175 = por %p173, %p174
      %p177 = scmp.ne.s32.totalorder %s162, %s176
      %p178 = scmp.eq.s32.totalorder %s26, 0
      %p179 = por %p177, %p178
      %s181 = sadd.s32 %s180, 1
      %p184 = scmp.eq.s32.totalorder %s20, 1
      %p185 = scmp.ne.s32.totalorder %s180, %s182
      %p186 = scmp.eq.s32.totalorder %s20, 0
      %p187 = por %p185, %p186
      %p188 = scmp.ne.s32.totalorder %s180, %s182
      %p189 = scmp.eq.s32.totalorder %s25, 1
      %p190 = por %p188, %p189
      %p191 = scmp.ne.s32.totalorder %s182, %s183
      %p192 = scmp.eq.s32.totalorder %s25, 0
      %p193 = por %p191, %p192
      %p194 = scmp.ne.s32.totalorder %s182, %s183
      %p195 = scmp.eq.s32.totalorder %s26, 1
      %p196 = por %p194, %p195
      %p198 = scmp.ne.s32.totalorder %s183, %s197
      %p199 = scmp.eq.s32.totalorder %s26, 0
      %p200 = por %p198, %p199
      %s202 = sadd.s32 %s201, 1
      %p205 = scmp.eq.s32.totalorder %s20, 1
      %p206 = scmp.ne.s32.totalorder %s201, %s203
      %p207 = scmp.eq.s32.totalorder %s20, 0
      %p208 = por %p206, %p207
      %p209 = scmp.ne.s32.totalorder %s201, %s203
      %p210 = scmp.eq.s32.totalorder %s25, 1
      %p211 = por %p209, %p210
      %p212 = scmp.ne.s32.totalorder %s203, %s204
      %p213 = scmp.eq.s32.totalorder %s25, 0
      %p214 = por %p212, %p213
      %p215 = scmp.ne.s32.totalorder %s203, %s204
      %p216 = scmp.eq.s32.totalorder %s26, 1
      %p217 = por %p215, %p216
      %p219 = scmp.ne.s32.totalorder %s204, %s218
      %p220 = scmp.eq.s32.totalorder %s26, 0
      %p221 = por %p219, %p220
      %s223 = sadd.s32 %s222, 1
      %p226 = scmp.eq.s32.totalorder %s20, 1
      %p227 = scmp.ne.s32.totalorder %s222, %s224
      %p228 = scmp.eq.s32.totalorder %s20, 0
      %p229 = por %p227, %p228
      %p230 = scmp.ne.s32.totalorder %s222, %s224
      %p231 = scmp.eq.s32.totalorder %s25, 1
      %p232 = por %p230, %p231
      %p233 = scmp.ne.s32.totalorder %s224, %s225
      %p234 = scmp.eq.s32.totalorder %s25, 0
      %p235 = por %p233, %p234
      %p236 = scmp.ne.s32.totalorder %s224, %s225
      %p237 = scmp.eq.s32.totalorder %s26, 1
      %p238 = por %p236, %p237
      %p240 = scmp.ne.s32.totalorder %s225, %s239
      %p241 = scmp.eq.s32.totalorder %s26, 0
      %p242 = por %p240, %p241
      %s243 = ssub.s32 %s20, %s27
      %p244 = scmp.eq.s32.totalorder %s243, 0
      %s246 = sadd.s32 %s245, 1
      %s247 = scalar_select %p244, %s245, %s246
      %p250 = pneg %p244
      %p251 = scmp.eq.s32.totalorder %s20, 1
      %p252 = por %p250, %p251
      %p253 = scmp.ne.s32.totalorder %s245, %s248
      %p254 = scmp.eq.s32.totalorder %s20, 0
      %p255 = por %p253, %p254
      %p256 = scmp.ne.s32.totalorder %s245, %s248
      %p257 = scmp.eq.s32.totalorder %s25, 1
      %p258 = por %p256, %p257
      %p259 = scmp.ne.s32.totalorder %s248, %s249
      %p260 = scmp.eq.s32.totalorder %s25, 0
      %p261 = por %p259, %p260
      %p262 = scmp.ne.s32.totalorder %s248, %s249
      %p263 = scmp.eq.s32.totalorder %s26, 1
      %p264 = por %p262, %p263
      %p266 = scmp.ne.s32.totalorder %s249, %s265
      %p267 = scmp.eq.s32.totalorder %s26, 0
      %p268 = por %p266, %p267
      %p269 = scmp.le.s32.totalorder 1, %s20
      %p270 = scmp.lt.s32.totalorder %s20, 3
      %p271 = pnand %p269, %p270
      %p272 = pneg %p271
      // Predicated region
      $region9: #{tpu_custom_call.1} parent=5 // pred_check
        _
      $region10: #{tpu_custom_call.1} parent=5 // pred_check_branch
        %274 = sbr.rel (%p271) target = $region12
      $region11: #{tpu_custom_call.1} parent=5 // pred_region
        %s275 = ssub.s32 %s20, 1
        // Predicated region
        $region13: #{tpu_custom_call.1} parent=11 // pred_check
          %p276 = pneg %p67
        $region14: #{tpu_custom_call.1} parent=11 // pred_check_branch
          %278 = sbr.rel (%p276) target = $region16
        $region15: #{tpu_custom_call.1} parent=11 // pred_region
          _
        $region16: #{tpu_custom_call.1} parent=11 // pred_fallthru
          _
        // Predicated region
        $region17: #{tpu_custom_call.1} parent=11 // pred_check
          %p279 = pneg %p88
        $region18: #{tpu_custom_call.1} parent=11 // pred_check_branch
          %281 = sbr.rel (%p279) target = $region20
        $region19: #{tpu_custom_call.1} parent=11 // pred_region
          _
        $region20: #{tpu_custom_call.1} parent=11 // pred_fallthru
          _
        // Predicated region
        $region21: #{tpu_custom_call.1} parent=11 // pred_check
          %p282 = pneg %p109
        $region22: #{tpu_custom_call.1} parent=11 // pred_check_branch
          %284 = sbr.rel (%p282) target = $region24
        $region23: #{tpu_custom_call.1} parent=11 // pred_region
          _
        $region24: #{tpu_custom_call.1} parent=11 // pred_fallthru
          _
        // Predicated region
        $region25: #{tpu_custom_call.1} parent=11 // pred_check
          %p285 = pneg %p130
        $region26: #{tpu_custom_call.1} parent=11 // pred_check_branch
          %287 = sbr.rel (%p285) target = $region28
        $region27: #{tpu_custom_call.1} parent=11 // pred_region
          _
        $region28: #{tpu_custom_call.1} parent=11 // pred_fallthru
          _
        // Predicated region
        $region29: #{tpu_custom_call.1} parent=11 // pred_check
          %p288 = pneg %p151
        $region30: #{tpu_custom_call.1} parent=11 // pred_check_branch
          %290 = sbr.rel (%p288) target = $region32
        $region31: #{tpu_custom_call.1} parent=11 // pred_region
          _
        $region32: #{tpu_custom_call.1} parent=11 // pred_fallthru
          _
        // Predicated region
        $region33: #{tpu_custom_call.1} parent=11 // pred_check
          %p291 = pneg %p172
        $region34: #{tpu_custom_call.1} parent=11 // pred_check_branch
          %293 = sbr.rel (%p291) target = $region36
        $region35: #{tpu_custom_call.1} parent=11 // pred_region
          _
        $region36: #{tpu_custom_call.1} parent=11 // pred_fallthru
          _
        // Predicated region
        $region37: #{tpu_custom_call.1} parent=11 // pred_check
          %p294 = pneg %p193
        $region38: #{tpu_custom_call.1} parent=11 // pred_check_branch
          %296 = sbr.rel (%p294) target = $region40
        $region39: #{tpu_custom_call.1} parent=11 // pred_region
          %s298 = ssub.s32 1024, 1024
          %299 = vsyncadd [#allocation3], %s298
          %s300 = sshll.u32 [#allocation2], 4
          %s301 = int_to_ptr.vmem [resolvable:$true] %s300
          %306 = dma.hbm_to_vmem [thread:$0]  %s7, 1024, %s301, [#allocation3], 64, 64, 4
        $region40: #{tpu_custom_call.1} parent=11 // pred_fallthru
          _
        // Predicated region
        $region41: #{tpu_custom_call.1} parent=11 // pred_check
          %p307 = pneg %p214
        $region42: #{tpu_custom_call.1} parent=11 // pred_check_branch
          %309 = sbr.rel (%p307) target = $region44
        $region43: #{tpu_custom_call.1} parent=11 // pred_region
          _
        $region44: #{tpu_custom_call.1} parent=11 // pred_fallthru
          _
        // Predicated region
        $region45: #{tpu_custom_call.1} parent=11 // pred_check
          %p310 = pneg %p235
        $region46: #{tpu_custom_call.1} parent=11 // pred_check_branch
          %312 = sbr.rel (%p310) target = $region48
        $region47: #{tpu_custom_call.1} parent=11 // pred_region
          _
        $region48: #{tpu_custom_call.1} parent=11 // pred_fallthru
          _
      $region12: #{tpu_custom_call.1} parent=5 // pred_fallthru
        _
      %p313 = scmp.lt.s32.totalorder %s20, 2
      // Predicated region
      $region49: #{tpu_custom_call.1} parent=5 // pred_check
        %p314 = pneg %p313
      $region50: #{tpu_custom_call.1} parent=5 // pred_check_branch
        %316 = sbr.rel (%p314) target = $region52
      $region51: #{tpu_custom_call.1} parent=5 // pred_region
        // Predicated region
        $region53: #{tpu_custom_call.1} parent=51 // pred_check
          %p317 = pneg %p40
        $region54: #{tpu_custom_call.1} parent=51 // pred_check_branch
          %319 = sbr.rel (%p317) target = $region56
        $region55: #{tpu_custom_call.1} parent=51 // pred_region
          %s320 = smul.u32 32, %s20
          %p321 = scmp.lt.s32.totalorder %s320, 63
          %s322 = scalar_select %p321, %s320, 63
          %s323 = smul.addr %s322, 4
          %s324 = scalar_lea.vmem %s0, %s323
          %s325 = smul.u32 32, %s20
        $region56: #{tpu_custom_call.1} parent=51 // pred_fallthru
          _
      $region52: #{tpu_custom_call.1} parent=5 // pred_fallthru
        _
      %p326 = scmp.le.s32.totalorder 1, %s20
      %p327 = scmp.lt.s32.totalorder %s20, 3
      %p328 = pnand %p326, %p327
      %p329 = pneg %p328
      // Predicated region
      $region57: #{tpu_custom_call.1} parent=5 // pred_check
        _
      $region58: #{tpu_custom_call.1} parent=5 // pred_check_branch
        %331 = sbr.rel (%p328) target = $region60
      $region59: #{tpu_custom_call.1} parent=5 // pred_region
        %s332 = ssub.s32 %s20, 1
        // Predicated region
        $region61: #{tpu_custom_call.1} parent=59 // pred_check
          %p333 = pneg %p193
        $region62: #{tpu_custom_call.1} parent=59 // pred_check_branch
          %335 = sbr.rel (%p333) target = $region64
        $region63: #{tpu_custom_call.1} parent=59 // pred_region
          %336 = dma.done [#allocation3], 1024
        $region64: #{tpu_custom_call.1} parent=59 // pred_fallthru
          _
        %s337 = smul.u32 32, %s25
        %p338 = scmp.lt.s32.totalorder %s337, 63
        %s339 = scalar_select %p338, %s337, 63
        %s340 = smul.addr %s339, 4
        %s341 = scalar_lea.vmem %s0, %s340
        %p342 = pneg %p46
        %p343 = pneg %p43
        %p344 = pneg %p67
        %p345 = pneg %p64
        %p346 = pneg %p88
        %p347 = pneg %p85
        %p348 = pneg %p109
        %p349 = pneg %p106
        %p350 = pneg %p130
        %p351 = pneg %p127
        %p352 = pneg %p151
        %p353 = pneg %p148
        %p354 = pneg %p172
        %p355 = pneg %p169
        %p356 = pneg %p193
        %p357 = pneg %p190
        %p358 = pneg %p214
        %p359 = pneg %p211
        %p360 = pneg %p235
        %p361 = pneg %p232
        %p362 = pneg %p261
        %p363 = pneg %p258
        %s364 = sand.u32 %s248, 1
        %s365 = scalar_lea.sflag [#allocation4], %s364
        %s366 = sand.u32 %s248, 1
        %s367 = smul.addr %s366, 256
        %s368 = scalar_lea.vmem [#allocation5], %s367
        %s369 = smul.u32 32, %s25
        %p370 = scmp.lt.s32.totalorder %s369, 63
        %s371 = scalar_select %p370, %s369, 63
        %s372 = smul.addr %s371, 4
        %s373 = scalar_lea.vmem %s0, %s372
        %s374 = smul.u32 32, %s25
        %s375 = smul.u32 32, %s25
        %v377 = vld [vmem:[%s373] sm:$0xf]
        %v378 = vld [vmem:[%s373 + $0x4] sm:$0xf]
        %v379 = vld [vmem:[%s373 + $0x8] sm:$0xf]
        %v380 = vld [vmem:[%s373 + $0xc] sm:$0xf]
        %v381 = vld [vmem:[%s373 + $0x10] sm:$0xf]
        %v382 = vld [vmem:[%s373 + $0x14] sm:$0xf]
        %v383 = vld [vmem:[%s373 + $0x18] sm:$0xf]
        %v384 = vld [vmem:[%s373 + $0x1c] sm:$0xf]
        %v385 = vld [vmem:[%s373 + $0x20] sm:$0xf]
        %v386 = vld [vmem:[%s373 + $0x24] sm:$0xf]
        %v387 = vld [vmem:[%s373 + $0x28] sm:$0xf]
        %v388 = vld [vmem:[%s373 + $0x2c] sm:$0xf]
        %v389 = vld [vmem:[%s373 + $0x30] sm:$0xf]
        %v390 = vld [vmem:[%s373 + $0x34] sm:$0xf]
        %v391 = vld [vmem:[%s373 + $0x38] sm:$0xf]
        %v392 = vld [vmem:[%s373 + $0x3c] sm:$0xf]
        %v393 = vld [vmem:[%s373 + $0x40] sm:$0xf]
        %v394 = vld [vmem:[%s373 + $0x44] sm:$0xf]
        %v395 = vld [vmem:[%s373 + $0x48] sm:$0xf]
        %v396 = vld [vmem:[%s373 + $0x4c] sm:$0xf]
        %v397 = vld [vmem:[%s373 + $0x50] sm:$0xf]
        %v398 = vld [vmem:[%s373 + $0x54] sm:$0xf]
        %v399 = vld [vmem:[%s373 + $0x58] sm:$0xf]
        %v400 = vld [vmem:[%s373 + $0x5c] sm:$0xf]
        %v401 = vld [vmem:[%s373 + $0x60] sm:$0xf]
        %v402 = vld [vmem:[%s373 + $0x64] sm:$0xf]
        %v403 = vld [vmem:[%s373 + $0x68] sm:$0xf]
        %v404 = vld [vmem:[%s373 + $0x6c] sm:$0xf]
        %v405 = vld [vmem:[%s373 + $0x70] sm:$0xf]
        %v406 = vld [vmem:[%s373 + $0x74] sm:$0xf]
        %v407 = vld [vmem:[%s373 + $0x78] sm:$0xf]
        %v408 = vld [vmem:[%s373 + $0x7c] sm:$0xf]
        %v409 = vld [vmem:[%s1] sm:$0xff]
        %v410 = vld [vmem:[%s1 + $0x8] sm:$0xff]
        %v411 = vld [vmem:[%s1 + $0x10] sm:$0xff]
        %v412 = vld [vmem:[%s1 + $0x18] sm:$0xff]
        %v413 = vld [vmem:[%s1 + $0x20] sm:$0xff]
        %v414 = vld [vmem:[%s1 + $0x28] sm:$0xff]
        %v415 = vld [vmem:[%s1 + $0x30] sm:$0xff]
        %v416 = vld [vmem:[%s1 + $0x38] sm:$0xff]
        %v417 = vld [vmem:[%s2] sm:$0x3]
        %v419 = vlaneseq
        %v420 = vshrl.u32 %v419, 7
        %v421 = vsub.s32 0, %v420
        %v422 = vrot.slane %v417, %v421
        %v423 = vlaneseq
        %v424 = vshrl.u32 %v423, 7
        %v425 = vsub.s32 1, %v424
        %v426 = vrot.slane %v417, %v425
        %v461 = vunpack.c.l.b16 %v377
        %v462 = vunpack.c.l.b16 %v378
        %v463 = vunpack.c.l.b16 %v379
        %v464 = vunpack.c.l.b16 %v380
        %v465 = vunpack.c.l.b16 %v381
        %v466 = vunpack.c.l.b16 %v382
        %v467 = vunpack.c.l.b16 %v383
        %v468 = vunpack.c.l.b16 %v384
        %v469 = vunpack.c.l.b16 %v385
        %v470 = vunpack.c.l.b16 %v386
        %v471 = vunpack.c.l.b16 %v387
        %v472 = vunpack.c.l.b16 %v388
        %v473 = vunpack.c.l.b16 %v389
        %v474 = vunpack.c.l.b16 %v390
        %v475 = vunpack.c.l.b16 %v391
        %v476 = vunpack.c.l.b16 %v392
        %v477 = vunpack.c.l.b16 %v393
        %v478 = vunpack.c.l.b16 %v394
        %v479 = vunpack.c.l.b16 %v395
        %v480 = vunpack.c.l.b16 %v396
        %v481 = vunpack.c.l.b16 %v397
        %v482 = vunpack.c.l.b16 %v398
        %v483 = vunpack.c.l.b16 %v399
        %v484 = vunpack.c.l.b16 %v400
        %v485 = vunpack.c.l.b16 %v401
        %v486 = vunpack.c.l.b16 %v402
        %v487 = vunpack.c.l.b16 %v403
        %v488 = vunpack.c.l.b16 %v404
        %v489 = vunpack.c.l.b16 %v405
        %v490 = vunpack.c.l.b16 %v406
        %v491 = vunpack.c.l.b16 %v407
        %v492 = vunpack.c.l.b16 %v408
        %v493 = vpack.c.b16 %v462, %v461
        %v494 = vpack.c.b16 %v464, %v463
        %v495 = vpack.c.b16 %v466, %v465
        %v496 = vpack.c.b16 %v468, %v467
        %v497 = vpack.c.b16 %v470, %v469
        %v498 = vpack.c.b16 %v472, %v471
        %v499 = vpack.c.b16 %v474, %v473
        %v500 = vpack.c.b16 %v476, %v475
        %v501 = vpack.c.b16 %v478, %v477
        %v502 = vpack.c.b16 %v480, %v479
        %v503 = vpack.c.b16 %v482, %v481
        %v504 = vpack.c.b16 %v484, %v483
        %v505 = vpack.c.b16 %v486, %v485
        %v506 = vpack.c.b16 %v488, %v487
        %v507 = vpack.c.b16 %v490, %v489
        %v508 = vpack.c.b16 %v492, %v491
        %v517 = vunpack.c.l.b16 %v409
        %v518 = vunpack.c.h.b16 %v409
        %v519 = vunpack.c.l.b16 %v410
        %v520 = vunpack.c.h.b16 %v410
        %v521 = vunpack.c.l.b16 %v411
        %v522 = vunpack.c.h.b16 %v411
        %v523 = vunpack.c.l.b16 %v412
        %v524 = vunpack.c.h.b16 %v412
        %v525 = vunpack.c.l.b16 %v413
        %v526 = vunpack.c.h.b16 %v413
        %v527 = vunpack.c.l.b16 %v414
        %v528 = vunpack.c.h.b16 %v414
        %v529 = vunpack.c.l.b16 %v415
        %v530 = vunpack.c.h.b16 %v415
        %v531 = vunpack.c.l.b16 %v416
        %v532 = vunpack.c.h.b16 %v416
        %v533 = vpack.c.b16 %v519, %v517
        %v534 = vpack.c.b16 %v520, %v518
        %v535 = vpack.c.b16 %v523, %v521
        %v536 = vpack.c.b16 %v524, %v522
        %v537 = vpack.c.b16 %v527, %v525
        %v538 = vpack.c.b16 %v528, %v526
        %v539 = vpack.c.b16 %v531, %v529
        %v540 = vpack.c.b16 %v532, %v530
        %vm549 = vcmask 523264
        %v551 = vsel %vm549, %v493, 0
        %v554 = vsel %vm549, %v494, 0
        %v557 = vsel %vm549, %v495, 0
        %v560 = vsel %vm549, %v496, 0
        %v563 = vsel %vm549, %v497, 0
        %v566 = vsel %vm549, %v498, 0
        %v569 = vsel %vm549, %v499, 0
        %v572 = vsel %vm549, %v500, 0
        %v575 = vsel %vm549, %v501, 0
        %v578 = vsel %vm549, %v502, 0
        %v581 = vsel %vm549, %v503, 0
        %v584 = vsel %vm549, %v504, 0
        %v587 = vsel %vm549, %v505, 0
        %v590 = vsel %vm549, %v506, 0
        %v593 = vsel %vm549, %v507, 0
        %v596 = vsel %vm549, %v508, 0
        %598 = vmatprep.subr.bf16.mxu0 %v534
        %599 = vmatpush1.bf16.msra.mxu0 %v533
        %600 = vmatprep.subr.bf16.mxu0 %v536
        %601 = vmatpush1.bf16.msra.mxu0 %v535
        %602 = vmatprep.subr.bf16.mxu0 %v538
        %603 = vmatpush1.bf16.msra.mxu0 %v537
        %604 = vmatprep.subr.bf16.mxu0 %v540
        %605 = vmatpush1.bf16.msra.mxu0 %v539
        %606 = vmatprep.subr.bf16.mxu0 0
        %607 = vmatpush1.bf16.msra.mxu0 0
        %608 = vmatprep.subr.bf16.mxu0 0
        %609 = vmatpush1.bf16.msra.mxu0 0
        %610 = vmatprep.subr.bf16.mxu0 0
        %611 = vmatpush1.bf16.msra.mxu0 0
        %612 = vmatprep.subr.bf16.mxu0 0
        %613 = vmatpush1.bf16.msra.mxu0 0
        %614 = vmatprep.subr.bf16.mxu0 0
        %615 = vmatpush1.bf16.msra.mxu0 0
        %616 = vmatprep.subr.bf16.mxu0 0
        %617 = vmatpush1.bf16.msra.mxu0 0
        %618 = vmatprep.subr.bf16.mxu0 0
        %619 = vmatpush1.bf16.msra.mxu0 0
        %620 = vmatprep.subr.bf16.mxu0 0
        %621 = vmatpush1.bf16.msra.mxu0 0
        %622 = vmatprep.subr.bf16.mxu0 0
        %623 = vmatpush1.bf16.msra.mxu0 0
        %624 = vmatprep.subr.bf16.mxu0 0
        %625 = vmatpush1.bf16.msra.mxu0 0
        %626 = vmatprep.subr.bf16.mxu0 0
        %627 = vmatpush1.bf16.msra.mxu0 0
        %628 = vmatprep.subr.bf16.mxu0 0
        %629 = vmatpush1.bf16.msra.mxu0 0
        %630 = vmatprep.mubr.bf16.mxu0 0
        %631 = vmatmul.mubr.bf16.gmra.mrb[0].mxu0 %v551
        %v632 = vpop.f32.mrb[0].mxu0
        %v633 = vadd.f32 %v422, %v632
        %v634 = vpop.f32.mrb[0].mxu0
        %v635 = vadd.f32 %v426, %v634
        %v636 = vpop.f32.mrb[0].mxu0
        %v637 = vadd.f32 %v422, %v636
        %v638 = vpop.f32.mrb[0].mxu0
        %v639 = vadd.f32 %v426, %v638
        %640 = vmatprep.mubr.bf16.mxu0 0
        %641 = vmatmul.mubr.bf16.gmra.mrb[0].mxu0 %v554
        %v642 = vpop.f32.mrb[0].mxu0
        %v643 = vadd.f32 %v422, %v642
        %v644 = vpop.f32.mrb[0].mxu0
        %v645 = vadd.f32 %v426, %v644
        %v646 = vpop.f32.mrb[0].mxu0
        %v647 = vadd.f32 %v422, %v646
        %v648 = vpop.f32.mrb[0].mxu0
        %v649 = vadd.f32 %v426, %v648
        %650 = vmatprep.mubr.bf16.mxu0 0
        %651 = vmatmul.mubr.bf16.gmra.mrb[0].mxu0 %v557
        %v652 = vpop.f32.mrb[0].mxu0
        %v653 = vadd.f32 %v422, %v652
        %v654 = vpop.f32.mrb[0].mxu0
        %v655 = vadd.f32 %v426, %v654
        %v656 = vpop.f32.mrb[0].mxu0
        %v657 = vadd.f32 %v422, %v656
        %v658 = vpop.f32.mrb[0].mxu0
        %v659 = vadd.f32 %v426, %v658
        %660 = vmatprep.mubr.bf16.mxu0 0
        %661 = vmatmul.mubr.bf16.gmra.mrb[0].mxu0 %v560
        %v662 = vpop.f32.mrb[0].mxu0
        %v663 = vadd.f32 %v422, %v662
        %v664 = vpop.f32.mrb[0].mxu0
        %v665 = vadd.f32 %v426, %v664
        %v666 = vpop.f32.mrb[0].mxu0
        %v667 = vadd.f32 %v422, %v666
        %v668 = vpop.f32.mrb[0].mxu0
        %v669 = vadd.f32 %v426, %v668
        %670 = vmatprep.mubr.bf16.mxu0 0
        %671 = vmatmul.mubr.bf16.gmra.mrb[0].mxu0 %v563
        %v672 = vpop.f32.mrb[0].mxu0
        %v673 = vadd.f32 %v422, %v672
        %v674 = vpop.f32.mrb[0].mxu0
        %v675 = vadd.f32 %v426, %v674
        %v676 = vpop.f32.mrb[0].mxu0
        %v677 = vadd.f32 %v422, %v676
        %v678 = vpop.f32.mrb[0].mxu0
        %v679 = vadd.f32 %v426, %v678
        %680 = vmatprep.mubr.bf16.mxu0 0
        %681 = vmatmul.mubr.bf16.gmra.mrb[0].mxu0 %v566
        %v682 = vpop.f32.mrb[0].mxu0
        %v683 = vadd.f32 %v422, %v682
        %v684 = vpop.f32.mrb[0].mxu0
        %v685 = vadd.f32 %v426, %v684
        %v686 = vpop.f32.mrb[0].mxu0
        %v687 = vadd.f32 %v422, %v686
        %v688 = vpop.f32.mrb[0].mxu0
        %v689 = vadd.f32 %v426, %v688
        %690 = vmatprep.mubr.bf16.mxu0 0
        %691 = vmatmul.mubr.bf16.gmra.mrb[0].mxu0 %v569
        %v692 = vpop.f32.mrb[0].mxu0
        %v693 = vadd.f32 %v422, %v692
        %v694 = vpop.f32.mrb[0].mxu0
        %v695 = vadd.f32 %v426, %v694
        %v696 = vpop.f32.mrb[0].mxu0
        %v697 = vadd.f32 %v422, %v696
        %v698 = vpop.f32.mrb[0].mxu0
        %v699 = vadd.f32 %v426, %v698
        %700 = vmatprep.mubr.bf16.mxu0 0
        %701 = vmatmul.mubr.bf16.gmra.mrb[0].mxu0 %v572
        %v702 = vpop.f32.mrb[0].mxu0
        %v703 = vadd.f32 %v422, %v702
        %v704 = vpop.f32.mrb[0].mxu0
        %v705 = vadd.f32 %v426, %v704
        %v706 = vpop.f32.mrb[0].mxu0
        %v707 = vadd.f32 %v422, %v706
        %v708 = vpop.f32.mrb[0].mxu0
        %v709 = vadd.f32 %v426, %v708
        %710 = vmatprep.mubr.bf16.mxu0 0
        %711 = vmatmul.mubr.bf16.gmra.mrb[0].mxu0 %v575
        %v712 = vpop.f32.mrb[0].mxu0
        %v713 = vadd.f32 %v422, %v712
        %v714 = vpop.f32.mrb[0].mxu0
        %v715 = vadd.f32 %v426, %v714
        %v716 = vpop.f32.mrb[0].mxu0
        %v717 = vadd.f32 %v422, %v716
        %v718 = vpop.f32.mrb[0].mxu0
        %v719 = vadd.f32 %v426, %v718
        %720 = vmatprep.mubr.bf16.mxu0 0
        %721 = vmatmul.mubr.bf16.gmra.mrb[0].mxu0 %v578
        %v722 = vpop.f32.mrb[0].mxu0
        %v723 = vadd.f32 %v422, %v722
        %v724 = vpop.f32.mrb[0].mxu0
        %v725 = vadd.f32 %v426, %v724
        %v726 = vpop.f32.mrb[0].mxu0
        %v727 = vadd.f32 %v422, %v726
        %v728 = vpop.f32.mrb[0].mxu0
        %v729 = vadd.f32 %v426, %v728
        %730 = vmatprep.mubr.bf16.mxu0 0
        %731 = vmatmul.mubr.bf16.gmra.mrb[0].mxu0 %v581
        %v732 = vpop.f32.mrb[0].mxu0
        %v733 = vadd.f32 %v422, %v732
        %v734 = vpop.f32.mrb[0].mxu0
        %v735 = vadd.f32 %v426, %v734
        %v736 = vpop.f32.mrb[0].mxu0
        %v737 = vadd.f32 %v422, %v736
        %v738 = vpop.f32.mrb[0].mxu0
        %v739 = vadd.f32 %v426, %v738
        %740 = vmatprep.mubr.bf16.mxu0 0
        %741 = vmatmul.mubr.bf16.gmra.mrb[0].mxu0 %v584
        %v742 = vpop.f32.mrb[0].mxu0
        %v743 = vadd.f32 %v422, %v742
        %v744 = vpop.f32.mrb[0].mxu0
        %v745 = vadd.f32 %v426, %v744
        %v746 = vpop.f32.mrb[0].mxu0
        %v747 = vadd.f32 %v422, %v746
        %v748 = vpop.f32.mrb[0].mxu0
        %v749 = vadd.f32 %v426, %v748
        %750 = vmatprep.mubr.bf16.mxu0 0
        %751 = vmatmul.mubr.bf16.gmra.mrb[0].mxu0 %v587
        %v752 = vpop.f32.mrb[0].mxu0
        %v753 = vadd.f32 %v422, %v752
        %v754 = vpop.f32.mrb[0].mxu0
        %v755 = vadd.f32 %v426, %v754
        %v756 = vpop.f32.mrb[0].mxu0
        %v757 = vadd.f32 %v422, %v756
        %v758 = vpop.f32.mrb[0].mxu0
        %v759 = vadd.f32 %v426, %v758
        %760 = vmatprep.mubr.bf16.mxu0 0
        %761 = vmatmul.mubr.bf16.gmra.mrb[0].mxu0 %v590
        %v762 = vpop.f32.mrb[0].mxu0
        %v763 = vadd.f32 %v422, %v762
        %v764 = vpop.f32.mrb[0].mxu0
        %v765 = vadd.f32 %v426, %v764
        %v766 = vpop.f32.mrb[0].mxu0
        %v767 = vadd.f32 %v422, %v766
        %v768 = vpop.f32.mrb[0].mxu0
        %v769 = vadd.f32 %v426, %v768
        %770 = vmatprep.mubr.bf16.mxu0 0
        %771 = vmatmul.mubr.bf16.gmra.mrb[0].mxu0 %v593
        %v772 = vpop.f32.mrb[0].mxu0
        %v773 = vadd.f32 %v422, %v772
        %v774 = vpop.f32.mrb[0].mxu0
        %v775 = vadd.f32 %v426, %v774
        %v776 = vpop.f32.mrb[0].mxu0
        %v777 = vadd.f32 %v422, %v776
        %v778 = vpop.f32.mrb[0].mxu0
        %v779 = vadd.f32 %v426, %v778
        %780 = vmatprep.mubr.bf16.mxu0 0
        %781 = vmatmul.mubr.bf16.gmra.mrb[0].mxu0 %v596
        %v782 = vpop.f32.mrb[0].mxu0
        %v783 = vadd.f32 %v422, %v782
        %v784 = vpop.f32.mrb[0].mxu0
        %v785 = vadd.f32 %v426, %v784
        %v786 = vpop.f32.mrb[0].mxu0
        %v787 = vadd.f32 %v422, %v786
        %v788 = vpop.f32.mrb[0].mxu0
        %v789 = vadd.f32 %v426, %v788
        %790 = vdwg.mxu0
        %v791 = vmax.f32 %v633, 0.0
        %v792 = vmax.f32 %v635, 0.0
        %v793 = vmax.f32 %v637, 0.0
        %v794 = vmax.f32 %v639, 0.0
        %v795 = vmax.f32 %v643, 0.0
        %v796 = vmax.f32 %v645, 0.0
        %v797 = vmax.f32 %v647, 0.0
        %v798 = vmax.f32 %v649, 0.0
        %v799 = vmax.f32 %v653, 0.0
        %v800 = vmax.f32 %v655, 0.0
        %v801 = vmax.f32 %v657, 0.0
        %v802 = vmax.f32 %v659, 0.0
        %v803 = vmax.f32 %v663, 0.0
        %v804 = vmax.f32 %v665, 0.0
        %v805 = vmax.f32 %v667, 0.0
        %v806 = vmax.f32 %v669, 0.0
        %v807 = vmax.f32 %v673, 0.0
        %v808 = vmax.f32 %v675, 0.0
        %v809 = vmax.f32 %v677, 0.0
        %v810 = vmax.f32 %v679, 0.0
        %v811 = vmax.f32 %v683, 0.0
        %v812 = vmax.f32 %v685, 0.0
        %v813 = vmax.f32 %v687, 0.0
        %v814 = vmax.f32 %v689, 0.0
        %v815 = vmax.f32 %v693, 0.0
        %v816 = vmax.f32 %v695, 0.0
        %v817 = vmax.f32 %v697, 0.0
        %v818 = vmax.f32 %v699, 0.0
        %v819 = vmax.f32 %v703, 0.0
        %v820 = vmax.f32 %v705, 0.0
        %v821 = vmax.f32 %v707, 0.0
        %v822 = vmax.f32 %v709, 0.0
        %v823 = vmax.f32 %v713, 0.0
        %v824 = vmax.f32 %v715, 0.0
        %v825 = vmax.f32 %v717, 0.0
        %v826 = vmax.f32 %v719, 0.0
        %v827 = vmax.f32 %v723, 0.0
        %v828 = vmax.f32 %v725, 0.0
        %v829 = vmax.f32 %v727, 0.0
        %v830 = vmax.f32 %v729, 0.0
        %v831 = vmax.f32 %v733, 0.0
        %v832 = vmax.f32 %v735, 0.0
        %v833 = vmax.f32 %v737, 0.0
        %v834 = vmax.f32 %v739, 0.0
        %v835 = vmax.f32 %v743, 0.0
        %v836 = vmax.f32 %v745, 0.0
        %v837 = vmax.f32 %v747, 0.0
        %v838 = vmax.f32 %v749, 0.0
        %v839 = vmax.f32 %v753, 0.0
        %v840 = vmax.f32 %v755, 0.0
        %v841 = vmax.f32 %v757, 0.0
        %v842 = vmax.f32 %v759, 0.0
        %v843 = vmax.f32 %v763, 0.0
        %v844 = vmax.f32 %v765, 0.0
        %v845 = vmax.f32 %v767, 0.0
        %v846 = vmax.f32 %v769, 0.0
        %v847 = vmax.f32 %v773, 0.0
        %v848 = vmax.f32 %v775, 0.0
        %v849 = vmax.f32 %v777, 0.0
        %v850 = vmax.f32 %v779, 0.0
        %v851 = vmax.f32 %v783, 0.0
        %v852 = vmax.f32 %v785, 0.0
        %v853 = vmax.f32 %v787, 0.0
        %v854 = vmax.f32 %v789, 0.0
        %v855 = vpack.c.bf16 %v793, %v791
        %v856 = vpack.c.bf16 %v794, %v792
        %v857 = vpack.c.bf16 %v797, %v795
        %v858 = vpack.c.bf16 %v798, %v796
        %v859 = vpack.c.bf16 %v801, %v799
        %v860 = vpack.c.bf16 %v802, %v800
        %v861 = vpack.c.bf16 %v805, %v803
        %v862 = vpack.c.bf16 %v806, %v804
        %v863 = vpack.c.bf16 %v809, %v807
        %v864 = vpack.c.bf16 %v810, %v808
        %v865 = vpack.c.bf16 %v813, %v811
        %v866 = vpack.c.bf16 %v814, %v812
        %v867 = vpack.c.bf16 %v817, %v815
        %v868 = vpack.c.bf16 %v818, %v816
        %v869 = vpack.c.bf16 %v821, %v819
        %v870 = vpack.c.bf16 %v822, %v820
        %v871 = vpack.c.bf16 %v825, %v823
        %v872 = vpack.c.bf16 %v826, %v824
        %v873 = vpack.c.bf16 %v829, %v827
        %v874 = vpack.c.bf16 %v830, %v828
        %v875 = vpack.c.bf16 %v833, %v831
        %v876 = vpack.c.bf16 %v834, %v832
        %v877 = vpack.c.bf16 %v837, %v835
        %v878 = vpack.c.bf16 %v838, %v836
        %v879 = vpack.c.bf16 %v841, %v839
        %v880 = vpack.c.bf16 %v842, %v840
        %v881 = vpack.c.bf16 %v845, %v843
        %v882 = vpack.c.bf16 %v846, %v844
        %v883 = vpack.c.bf16 %v849, %v847
        %v884 = vpack.c.bf16 %v850, %v848
        %v885 = vpack.c.bf16 %v853, %v851
        %v886 = vpack.c.bf16 %v854, %v852
        %v887 = vld [vmem:[%s3] sm:$0xf]
        %v888 = vld [vmem:[%s3 + $0x4] sm:$0xf]
        %v889 = vld [vmem:[%s3 + $0x8] sm:$0xf]
        %v890 = vld [vmem:[%s3 + $0xc] sm:$0xf]
        %v891 = vld [vmem:[%s3 + $0x10] sm:$0xf]
        %v892 = vld [vmem:[%s3 + $0x14] sm:$0xf]
        %v893 = vld [vmem:[%s3 + $0x18] sm:$0xf]
        %v894 = vld [vmem:[%s3 + $0x1c] sm:$0xf]
        %v895 = vld [vmem:[%s3 + $0x20] sm:$0xf]
        %v896 = vld [vmem:[%s3 + $0x24] sm:$0xf]
        %v897 = vld [vmem:[%s3 + $0x28] sm:$0xf]
        %v898 = vld [vmem:[%s3 + $0x2c] sm:$0xf]
        %v899 = vld [vmem:[%s3 + $0x30] sm:$0xf]
        %v900 = vld [vmem:[%s3 + $0x34] sm:$0xf]
        %v901 = vld [vmem:[%s3 + $0x38] sm:$0xf]
        %v902 = vld [vmem:[%s3 + $0x3c] sm:$0xf]
        %v903 = vld [vmem:[%s3 + $0x40] sm:$0xf]
        %v904 = vld [vmem:[%s3 + $0x44] sm:$0xf]
        %v905 = vld [vmem:[%s3 + $0x48] sm:$0xf]
        %v906 = vld [vmem:[%s3 + $0x4c] sm:$0xf]
        %v907 = vld [vmem:[%s3 + $0x50] sm:$0xf]
        %v908 = vld [vmem:[%s3 + $0x54] sm:$0xf]
        %v909 = vld [vmem:[%s3 + $0x58] sm:$0xf]
        %v910 = vld [vmem:[%s3 + $0x5c] sm:$0xf]
        %v911 = vld [vmem:[%s3 + $0x60] sm:$0xf]
        %v912 = vld [vmem:[%s3 + $0x64] sm:$0xf]
        %v913 = vld [vmem:[%s3 + $0x68] sm:$0xf]
        %v914 = vld [vmem:[%s3 + $0x6c] sm:$0xf]
        %v915 = vld [vmem:[%s3 + $0x70] sm:$0xf]
        %v916 = vld [vmem:[%s3 + $0x74] sm:$0xf]
        %v917 = vld [vmem:[%s3 + $0x78] sm:$0xf]
        %v918 = vld [vmem:[%s3 + $0x7c] sm:$0xf]
        %v919 = vld [vmem:[%s4] sm:$0x1]
        %v921 = vlaneseq
        %v922 = vshrl.u32 %v921, 7
        %v923 = vsub.s32 0, %v922
        %v924 = vrot.slane %v919, %v923
        %v958 = vunpack.c.l.b16 %v887
        %v959 = vunpack.c.l.b16 %v888
        %v960 = vunpack.c.l.b16 %v889
        %v961 = vunpack.c.l.b16 %v890
        %v962 = vunpack.c.l.b16 %v891
        %v963 = vunpack.c.l.b16 %v892
        %v964 = vunpack.c.l.b16 %v893
        %v965 = vunpack.c.l.b16 %v894
        %v966 = vunpack.c.l.b16 %v895
        %v967 = vunpack.c.l.b16 %v896
        %v968 = vunpack.c.l.b16 %v897
        %v969 = vunpack.c.l.b16 %v898
        %v970 = vunpack.c.l.b16 %v899
        %v971 = vunpack.c.l.b16 %v900
        %v972 = vunpack.c.l.b16 %v901
        %v973 = vunpack.c.l.b16 %v902
        %v974 = vunpack.c.l.b16 %v903
        %v975 = vunpack.c.l.b16 %v904
        %v976 = vunpack.c.l.b16 %v905
        %v977 = vunpack.c.l.b16 %v906
        %v978 = vunpack.c.l.b16 %v907
        %v979 = vunpack.c.l.b16 %v908
        %v980 = vunpack.c.l.b16 %v909
        %v981 = vunpack.c.l.b16 %v910
        %v982 = vunpack.c.l.b16 %v911
        %v983 = vunpack.c.l.b16 %v912
        %v984 = vunpack.c.l.b16 %v913
        %v985 = vunpack.c.l.b16 %v914
        %v986 = vunpack.c.l.b16 %v915
        %v987 = vunpack.c.l.b16 %v916
        %v988 = vunpack.c.l.b16 %v917
        %v989 = vunpack.c.l.b16 %v918
        %v990 = vpack.c.b16 %v959, %v958
        %v991 = vpack.c.b16 %v961, %v960
        %v992 = vpack.c.b16 %v963, %v962
        %v993 = vpack.c.b16 %v965, %v964
        %v994 = vpack.c.b16 %v967, %v966
        %v995 = vpack.c.b16 %v969, %v968
        %v996 = vpack.c.b16 %v971, %v970
        %v997 = vpack.c.b16 %v973, %v972
        %v998 = vpack.c.b16 %v975, %v974
        %v999 = vpack.c.b16 %v977, %v976
        %v1000 = vpack.c.b16 %v979, %v978
        %v1001 = vpack.c.b16 %v981, %v980
        %v1002 = vpack.c.b16 %v983, %v982
        %v1003 = vpack.c.b16 %v985, %v984
        %v1004 = vpack.c.b16 %v987, %v986
        %v1005 = vpack.c.b16 %v989, %v988
        %1022 = vmatprep.subr.bf16.mxu0 0
        %1023 = vmatpush1.bf16.msra.mxu0 %v990
        %1024 = vmatprep.subr.bf16.mxu0 0
        %1025 = vmatpush1.bf16.msra.mxu0 %v991
        %1026 = vmatprep.subr.bf16.mxu0 0
        %1027 = vmatpush1.bf16.msra.mxu0 %v992
        %1028 = vmatprep.subr.bf16.mxu0 0
        %1029 = vmatpush1.bf16.msra.mxu0 %v993
        %1030 = vmatprep.subr.bf16.mxu0 0
        %1031 = vmatpush1.bf16.msra.mxu0 %v994
        %1032 = vmatprep.subr.bf16.mxu0 0
        %1033 = vmatpush1.bf16.msra.mxu0 %v995
        %1034 = vmatprep.subr.bf16.mxu0 0
        %1035 = vmatpush1.bf16.msra.mxu0 %v996
        %1036 = vmatprep.subr.bf16.mxu0 0
        %1037 = vmatpush1.bf16.msra.mxu0 %v997
        %1038 = vmatprep.subr.bf16.mxu0 0
        %1039 = vmatpush1.bf16.msra.mxu0 %v998
        %1040 = vmatprep.subr.bf16.mxu0 0
        %1041 = vmatpush1.bf16.msra.mxu0 %v999
        %1042 = vmatprep.subr.bf16.mxu0 0
        %1043 = vmatpush1.bf16.msra.mxu0 %v1000
        %1044 = vmatprep.subr.bf16.mxu0 0
        %1045 = vmatpush1.bf16.msra.mxu0 %v1001
        %1046 = vmatprep.subr.bf16.mxu0 0
        %1047 = vmatpush1.bf16.msra.mxu0 %v1002
        %1048 = vmatprep.subr.bf16.mxu0 0
        %1049 = vmatpush1.bf16.msra.mxu0 %v1003
        %1050 = vmatprep.subr.bf16.mxu0 0
        %1051 = vmatpush1.bf16.msra.mxu0 %v1004
        %1052 = vmatprep.subr.bf16.mxu0 0
        %1053 = vmatpush1.bf16.msra.mxu0 %v1005
        %1054 = vmatprep.mubr.bf16.mxu0 %v856
        %1055 = vmatmul.mubr.bf16.gmra.mrb[0].mxu0 %v855
        %v1056 = vpop.f32.mrb[0].mxu0
        %v1057 = vadd.f32 %v924, %v1056
        %v1058 = vpop.f32.mrb[0].mxu0
        %v1059 = vpop.f32.mrb[0].mxu0
        %v1060 = vadd.f32 %v924, %v1059
        %v1061 = vpop.f32.mrb[0].mxu0
        %1062 = vmatprep.mubr.bf16.mxu0 %v858
        %1063 = vmatmul.mubr.bf16.gmra.mrb[0].mxu0 %v857
        %v1064 = vpop.f32.mrb[0].mxu0
        %v1065 = vadd.f32 %v924, %v1064
        %v1066 = vpop.f32.mrb[0].mxu0
        %v1067 = vpop.f32.mrb[0].mxu0
        %v1068 = vadd.f32 %v924, %v1067
        %v1069 = vpop.f32.mrb[0].mxu0
        %1070 = vmatprep.mubr.bf16.mxu0 %v860
        %1071 = vmatmul.mubr.bf16.gmra.mrb[0].mxu0 %v859
        %v1072 = vpop.f32.mrb[0].mxu0
        %v1073 = vadd.f32 %v924, %v1072
        %v1074 = vpop.f32.mrb[0].mxu0
        %v1075 = vpop.f32.mrb[0].mxu0
        %v1076 = vadd.f32 %v924, %v1075
        %v1077 = vpop.f32.mrb[0].mxu0
        %1078 = vmatprep.mubr.bf16.mxu0 %v862
        %1079 = vmatmul.mubr.bf16.gmra.mrb[0].mxu0 %v861
        %v1080 = vpop.f32.mrb[0].mxu0
        %v1081 = vadd.f32 %v924, %v1080
        %v1082 = vpop.f32.mrb[0].mxu0
        %v1083 = vpop.f32.mrb[0].mxu0
        %v1084 = vadd.f32 %v924, %v1083
        %v1085 = vpop.f32.mrb[0].mxu0
        %1086 = vmatprep.mubr.bf16.mxu0 %v864
        %1087 = vmatmul.mubr.bf16.gmra.mrb[0].mxu0 %v863
        %v1088 = vpop.f32.mrb[0].mxu0
        %v1089 = vadd.f32 %v924, %v1088
        %v1090 = vpop.f32.mrb[0].mxu0
        %v1091 = vpop.f32.mrb[0].mxu0
        %v1092 = vadd.f32 %v924, %v1091
        %v1093 = vpop.f32.mrb[0].mxu0
        %1094 = vmatprep.mubr.bf16.mxu0 %v866
        %1095 = vmatmul.mubr.bf16.gmra.mrb[0].mxu0 %v865
        %v1096 = vpop.f32.mrb[0].mxu0
        %v1097 = vadd.f32 %v924, %v1096
        %v1098 = vpop.f32.mrb[0].mxu0
        %v1099 = vpop.f32.mrb[0].mxu0
        %v1100 = vadd.f32 %v924, %v1099
        %v1101 = vpop.f32.mrb[0].mxu0
        %1102 = vmatprep.mubr.bf16.mxu0 %v868
        %1103 = vmatmul.mubr.bf16.gmra.mrb[0].mxu0 %v867
        %v1104 = vpop.f32.mrb[0].mxu0
        %v1105 = vadd.f32 %v924, %v1104
        %v1106 = vpop.f32.mrb[0].mxu0
        %v1107 = vpop.f32.mrb[0].mxu0
        %v1108 = vadd.f32 %v924, %v1107
        %v1109 = vpop.f32.mrb[0].mxu0
        %1110 = vmatprep.mubr.bf16.mxu0 %v870
        %1111 = vmatmul.mubr.bf16.gmra.mrb[0].mxu0 %v869
        %v1112 = vpop.f32.mrb[0].mxu0
        %v1113 = vadd.f32 %v924, %v1112
        %v1114 = vpop.f32.mrb[0].mxu0
        %v1115 = vpop.f32.mrb[0].mxu0
        %v1116 = vadd.f32 %v924, %v1115
        %v1117 = vpop.f32.mrb[0].mxu0
        %1118 = vmatprep.mubr.bf16.mxu0 %v872
        %1119 = vmatmul.mubr.bf16.gmra.mrb[0].mxu0 %v871
        %v1120 = vpop.f32.mrb[0].mxu0
        %v1121 = vadd.f32 %v924, %v1120
        %v1122 = vpop.f32.mrb[0].mxu0
        %v1123 = vpop.f32.mrb[0].mxu0
        %v1124 = vadd.f32 %v924, %v1123
        %v1125 = vpop.f32.mrb[0].mxu0
        %1126 = vmatprep.mubr.bf16.mxu0 %v874
        %1127 = vmatmul.mubr.bf16.gmra.mrb[0].mxu0 %v873
        %v1128 = vpop.f32.mrb[0].mxu0
        %v1129 = vadd.f32 %v924, %v1128
        %v1130 = vpop.f32.mrb[0].mxu0
        %v1131 = vpop.f32.mrb[0].mxu0
        %v1132 = vadd.f32 %v924, %v1131
        %v1133 = vpop.f32.mrb[0].mxu0
        %1134 = vmatprep.mubr.bf16.mxu0 %v876
        %1135 = vmatmul.mubr.bf16.gmra.mrb[0].mxu0 %v875
        %v1136 = vpop.f32.mrb[0].mxu0
        %v1137 = vadd.f32 %v924, %v1136
        %v1138 = vpop.f32.mrb[0].mxu0
        %v1139 = vpop.f32.mrb[0].mxu0
        %v1140 = vadd.f32 %v924, %v1139
        %v1141 = vpop.f32.mrb[0].mxu0
        %1142 = vmatprep.mubr.bf16.mxu0 %v878
        %1143 = vmatmul.mubr.bf16.gmra.mrb[0].mxu0 %v877
        %v1144 = vpop.f32.mrb[0].mxu0
        %v1145 = vadd.f32 %v924, %v1144
        %v1146 = vpop.f32.mrb[0].mxu0
        %v1147 = vpop.f32.mrb[0].mxu0
        %v1148 = vadd.f32 %v924, %v1147
        %v1149 = vpop.f32.mrb[0].mxu0
        %1150 = vmatprep.mubr.bf16.mxu0 %v880
        %1151 = vmatmul.mubr.bf16.gmra.mrb[0].mxu0 %v879
        %v1152 = vpop.f32.mrb[0].mxu0
        %v1153 = vadd.f32 %v924, %v1152
        %v1154 = vpop.f32.mrb[0].mxu0
        %v1155 = vpop.f32.mrb[0].mxu0
        %v1156 = vadd.f32 %v924, %v1155
        %v1157 = vpop.f32.mrb[0].mxu0
        %1158 = vmatprep.mubr.bf16.mxu0 %v882
        %1159 = vmatmul.mubr.bf16.gmra.mrb[0].mxu0 %v881
        %v1160 = vpop.f32.mrb[0].mxu0
        %v1161 = vadd.f32 %v924, %v1160
        %v1162 = vpop.f32.mrb[0].mxu0
        %v1163 = vpop.f32.mrb[0].mxu0
        %v1164 = vadd.f32 %v924, %v1163
        %v1165 = vpop.f32.mrb[0].mxu0
        %1166 = vmatprep.mubr.bf16.mxu0 %v884
        %1167 = vmatmul.mubr.bf16.gmra.mrb[0].mxu0 %v883
        %v1168 = vpop.f32.mrb[0].mxu0
        %v1169 = vadd.f32 %v924, %v1168
        %v1170 = vpop.f32.mrb[0].mxu0
        %v1171 = vpop.f32.mrb[0].mxu0
        %v1172 = vadd.f32 %v924, %v1171
        %v1173 = vpop.f32.mrb[0].mxu0
        %1174 = vmatprep.mubr.bf16.mxu0 %v886
        %1175 = vmatmul.mubr.bf16.gmra.mrb[0].mxu0 %v885
        %v1176 = vpop.f32.mrb[0].mxu0
        %v1177 = vadd.f32 %v924, %v1176
        %v1178 = vpop.f32.mrb[0].mxu0
        %v1179 = vpop.f32.mrb[0].mxu0
        %v1180 = vadd.f32 %v924, %v1179
        %v1181 = vpop.f32.mrb[0].mxu0
        %1182 = vdwg.mxu0
        %v1183 = vmax.f32 %v1057, 0.0
        %v1184 = vmax.f32 %v1060, 0.0
        %v1185 = vmax.f32 %v1065, 0.0
        %v1186 = vmax.f32 %v1068, 0.0
        %v1187 = vmax.f32 %v1073, 0.0
        %v1188 = vmax.f32 %v1076, 0.0
        %v1189 = vmax.f32 %v1081, 0.0
        %v1190 = vmax.f32 %v1084, 0.0
        %v1191 = vmax.f32 %v1089, 0.0
        %v1192 = vmax.f32 %v1092, 0.0
        %v1193 = vmax.f32 %v1097, 0.0
        %v1194 = vmax.f32 %v1100, 0.0
        %v1195 = vmax.f32 %v1105, 0.0
        %v1196 = vmax.f32 %v1108, 0.0
        %v1197 = vmax.f32 %v1113, 0.0
        %v1198 = vmax.f32 %v1116, 0.0
        %v1199 = vmax.f32 %v1121, 0.0
        %v1200 = vmax.f32 %v1124, 0.0
        %v1201 = vmax.f32 %v1129, 0.0
        %v1202 = vmax.f32 %v1132, 0.0
        %v1203 = vmax.f32 %v1137, 0.0
        %v1204 = vmax.f32 %v1140, 0.0
        %v1205 = vmax.f32 %v1145, 0.0
        %v1206 = vmax.f32 %v1148, 0.0
        %v1207 = vmax.f32 %v1153, 0.0
        %v1208 = vmax.f32 %v1156, 0.0
        %v1209 = vmax.f32 %v1161, 0.0
        %v1210 = vmax.f32 %v1164, 0.0
        %v1211 = vmax.f32 %v1169, 0.0
        %v1212 = vmax.f32 %v1172, 0.0
        %v1213 = vmax.f32 %v1177, 0.0
        %v1214 = vmax.f32 %v1180, 0.0
        %v1215 = vpack.c.bf16 %v1184, %v1183
        %v1216 = vpack.c.bf16 %v1186, %v1185
        %v1217 = vpack.c.bf16 %v1188, %v1187
        %v1218 = vpack.c.bf16 %v1190, %v1189
        %v1219 = vpack.c.bf16 %v1192, %v1191
        %v1220 = vpack.c.bf16 %v1194, %v1193
        %v1221 = vpack.c.bf16 %v1196, %v1195
        %v1222 = vpack.c.bf16 %v1198, %v1197
        %v1223 = vpack.c.bf16 %v1200, %v1199
        %v1224 = vpack.c.bf16 %v1202, %v1201
        %v1225 = vpack.c.bf16 %v1204, %v1203
        %v1226 = vpack.c.bf16 %v1206, %v1205
        %v1227 = vpack.c.bf16 %v1208, %v1207
        %v1228 = vpack.c.bf16 %v1210, %v1209
        %v1229 = vpack.c.bf16 %v1212, %v1211
        %v1230 = vpack.c.bf16 %v1214, %v1213
        %v1231 = vld [vmem:[%s5] sm:$0xf]
        %v1232 = vld [vmem:[%s5 + $0x4] sm:$0xf]
        %v1233 = vld [vmem:[%s5 + $0x8] sm:$0xf]
        %v1234 = vld [vmem:[%s5 + $0xc] sm:$0xf]
        %v1235 = vld [vmem:[%s5 + $0x10] sm:$0xf]
        %v1236 = vld [vmem:[%s5 + $0x14] sm:$0xf]
        %v1237 = vld [vmem:[%s5 + $0x18] sm:$0xf]
        %v1238 = vld [vmem:[%s5 + $0x1c] sm:$0xf]
        %v1239 = vld [vmem:[%s5 + $0x20] sm:$0xf]
        %v1240 = vld [vmem:[%s5 + $0x24] sm:$0xf]
        %v1241 = vld [vmem:[%s5 + $0x28] sm:$0xf]
        %v1242 = vld [vmem:[%s5 + $0x2c] sm:$0xf]
        %v1243 = vld [vmem:[%s5 + $0x30] sm:$0xf]
        %v1244 = vld [vmem:[%s5 + $0x34] sm:$0xf]
        %v1245 = vld [vmem:[%s5 + $0x38] sm:$0xf]
        %v1246 = vld [vmem:[%s5 + $0x3c] sm:$0xf]
        %v1247 = vld [vmem:[%s6] sm:$0x1]
        %v1249 = vlaneseq
        %v1250 = vshrl.u32 %v1249, 7
        %v1251 = vsub.s32 0, %v1250
        %v1252 = vrot.slane %v1247, %v1251
        %v1270 = vunpack.c.l.b16 %v1231
        %v1271 = vunpack.c.l.b16 %v1232
        %v1272 = vunpack.c.l.b16 %v1233
        %v1273 = vunpack.c.l.b16 %v1234
        %v1274 = vunpack.c.l.b16 %v1235
        %v1275 = vunpack.c.l.b16 %v1236
        %v1276 = vunpack.c.l.b16 %v1237
        %v1277 = vunpack.c.l.b16 %v1238
        %v1278 = vunpack.c.l.b16 %v1239
        %v1279 = vunpack.c.l.b16 %v1240
        %v1280 = vunpack.c.l.b16 %v1241
        %v1281 = vunpack.c.l.b16 %v1242
        %v1282 = vunpack.c.l.b16 %v1243
        %v1283 = vunpack.c.l.b16 %v1244
        %v1284 = vunpack.c.l.b16 %v1245
        %v1285 = vunpack.c.l.b16 %v1246
        %v1286 = vpack.c.b16 %v1271, %v1270
        %v1287 = vpack.c.b16 %v1273, %v1272
        %v1288 = vpack.c.b16 %v1275, %v1274
        %v1289 = vpack.c.b16 %v1277, %v1276
        %v1290 = vpack.c.b16 %v1279, %v1278
        %v1291 = vpack.c.b16 %v1281, %v1280
        %v1292 = vpack.c.b16 %v1283, %v1282
        %v1293 = vpack.c.b16 %v1285, %v1284
        %1302 = vmatprep.subr.bf16.mxu0 0
        %1303 = vmatpush1.bf16.msra.mxu0 %v1286
        %1304 = vmatprep.subr.bf16.mxu0 0
        %1305 = vmatpush1.bf16.msra.mxu0 %v1287
        %1306 = vmatprep.subr.bf16.mxu0 0
        %1307 = vmatpush1.bf16.msra.mxu0 %v1288
        %1308 = vmatprep.subr.bf16.mxu0 0
        %1309 = vmatpush1.bf16.msra.mxu0 %v1289
        %1310 = vmatprep.subr.bf16.mxu0 0
        %1311 = vmatpush1.bf16.msra.mxu0 %v1290
        %1312 = vmatprep.subr.bf16.mxu0 0
        %1313 = vmatpush1.bf16.msra.mxu0 %v1291
        %1314 = vmatprep.subr.bf16.mxu0 0
        %1315 = vmatpush1.bf16.msra.mxu0 %v1292
        %1316 = vmatprep.subr.bf16.mxu0 0
        %1317 = vmatpush1.bf16.msra.mxu0 %v1293
        %1318 = vmatprep.subr.bf16.mxu0 0
        %1319 = vmatpush1.bf16.msra.mxu0 0
        %1320 = vmatprep.subr.bf16.mxu0 0
        %1321 = vmatpush1.bf16.msra.mxu0 0
        %1322 = vmatprep.subr.bf16.mxu0 0
        %1323 = vmatpush1.bf16.msra.mxu0 0
        %1324 = vmatprep.subr.bf16.mxu0 0
        %1325 = vmatpush1.bf16.msra.mxu0 0
        %1326 = vmatprep.subr.bf16.mxu0 0
        %1327 = vmatpush1.bf16.msra.mxu0 0
        %1328 = vmatprep.subr.bf16.mxu0 0
        %1329 = vmatpush1.bf16.msra.mxu0 0
        %1330 = vmatprep.subr.bf16.mxu0 0
        %1331 = vmatpush1.bf16.msra.mxu0 0
        %1332 = vmatprep.subr.bf16.mxu0 0
        %1333 = vmatpush1.bf16.msra.mxu0 0
        %1334 = vmatprep.mubr.bf16.mxu0 0
        %1335 = vmatmul.mubr.bf16.gmra.mrb[0].mxu0 %v1215
        %v1336 = vpop.f32.mrb[0].mxu0
        %v1337 = vadd.f32 %v1252, %v1336
        %v1338 = vpop.f32.mrb[0].mxu0
        %v1339 = vpop.f32.mrb[0].mxu0
        %v1340 = vadd.f32 %v1252, %v1339
        %v1341 = vpop.f32.mrb[0].mxu0
        %1342 = vmatprep.mubr.bf16.mxu0 0
        %1343 = vmatmul.mubr.bf16.gmra.mrb[0].mxu0 %v1216
        %v1344 = vpop.f32.mrb[0].mxu0
        %v1345 = vadd.f32 %v1252, %v1344
        %v1346 = vpop.f32.mrb[0].mxu0
        %v1347 = vpop.f32.mrb[0].mxu0
        %v1348 = vadd.f32 %v1252, %v1347
        %v1349 = vpop.f32.mrb[0].mxu0
        %1350 = vmatprep.mubr.bf16.mxu0 0
        %1351 = vmatmul.mubr.bf16.gmra.mrb[0].mxu0 %v1217
        %v1352 = vpop.f32.mrb[0].mxu0
        %v1353 = vadd.f32 %v1252, %v1352
        %v1354 = vpop.f32.mrb[0].mxu0
        %v1355 = vpop.f32.mrb[0].mxu0
        %v1356 = vadd.f32 %v1252, %v1355
        %v1357 = vpop.f32.mrb[0].mxu0
        %1358 = vmatprep.mubr.bf16.mxu0 0
        %1359 = vmatmul.mubr.bf16.gmra.mrb[0].mxu0 %v1218
        %v1360 = vpop.f32.mrb[0].mxu0
        %v1361 = vadd.f32 %v1252, %v1360
        %v1362 = vpop.f32.mrb[0].mxu0
        %v1363 = vpop.f32.mrb[0].mxu0
        %v1364 = vadd.f32 %v1252, %v1363
        %v1365 = vpop.f32.mrb[0].mxu0
        %1366 = vmatprep.mubr.bf16.mxu0 0
        %1367 = vmatmul.mubr.bf16.gmra.mrb[0].mxu0 %v1219
        %v1368 = vpop.f32.mrb[0].mxu0
        %v1369 = vadd.f32 %v1252, %v1368
        %v1370 = vpop.f32.mrb[0].mxu0
        %v1371 = vpop.f32.mrb[0].mxu0
        %v1372 = vadd.f32 %v1252, %v1371
        %v1373 = vpop.f32.mrb[0].mxu0
        %1374 = vmatprep.mubr.bf16.mxu0 0
        %1375 = vmatmul.mubr.bf16.gmra.mrb[0].mxu0 %v1220
        %v1376 = vpop.f32.mrb[0].mxu0
        %v1377 = vadd.f32 %v1252, %v1376
        %v1378 = vpop.f32.mrb[0].mxu0
        %v1379 = vpop.f32.mrb[0].mxu0
        %v1380 = vadd.f32 %v1252, %v1379
        %v1381 = vpop.f32.mrb[0].mxu0
        %1382 = vmatprep.mubr.bf16.mxu0 0
        %1383 = vmatmul.mubr.bf16.gmra.mrb[0].mxu0 %v1221
        %v1384 = vpop.f32.mrb[0].mxu0
        %v1385 = vadd.f32 %v1252, %v1384
        %v1386 = vpop.f32.mrb[0].mxu0
        %v1387 = vpop.f32.mrb[0].mxu0
        %v1388 = vadd.f32 %v1252, %v1387
        %v1389 = vpop.f32.mrb[0].mxu0
        %1390 = vmatprep.mubr.bf16.mxu0 0
        %1391 = vmatmul.mubr.bf16.gmra.mrb[0].mxu0 %v1222
        %v1392 = vpop.f32.mrb[0].mxu0
        %v1393 = vadd.f32 %v1252, %v1392
        %v1394 = vpop.f32.mrb[0].mxu0
        %v1395 = vpop.f32.mrb[0].mxu0
        %v1396 = vadd.f32 %v1252, %v1395
        %v1397 = vpop.f32.mrb[0].mxu0
        %1398 = vmatprep.mubr.bf16.mxu0 0
        %1399 = vmatmul.mubr.bf16.gmra.mrb[0].mxu0 %v1223
        %v1400 = vpop.f32.mrb[0].mxu0
        %v1401 = vadd.f32 %v1252, %v1400
        %v1402 = vpop.f32.mrb[0].mxu0
        %v1403 = vpop.f32.mrb[0].mxu0
        %v1404 = vadd.f32 %v1252, %v1403
        %v1405 = vpop.f32.mrb[0].mxu0
        %1406 = vmatprep.mubr.bf16.mxu0 0
        %1407 = vmatmul.mubr.bf16.gmra.mrb[0].mxu0 %v1224
        %v1408 = vpop.f32.mrb[0].mxu0
        %v1409 = vadd.f32 %v1252, %v1408
        %v1410 = vpop.f32.mrb[0].mxu0
        %v1411 = vpop.f32.mrb[0].mxu0
        %v1412 = vadd.f32 %v1252, %v1411
        %v1413 = vpop.f32.mrb[0].mxu0
        %1414 = vmatprep.mubr.bf16.mxu0 0
        %1415 = vmatmul.mubr.bf16.gmra.mrb[0].mxu0 %v1225
        %v1416 = vpop.f32.mrb[0].mxu0
        %v1417 = vadd.f32 %v1252, %v1416
        %v1418 = vpop.f32.mrb[0].mxu0
        %v1419 = vpop.f32.mrb[0].mxu0
        %v1420 = vadd.f32 %v1252, %v1419
        %v1421 = vpop.f32.mrb[0].mxu0
        %1422 = vmatprep.mubr.bf16.mxu0 0
        %1423 = vmatmul.mubr.bf16.gmra.mrb[0].mxu0 %v1226
        %v1424 = vpop.f32.mrb[0].mxu0
        %v1425 = vadd.f32 %v1252, %v1424
        %v1426 = vpop.f32.mrb[0].mxu0
        %v1427 = vpop.f32.mrb[0].mxu0
        %v1428 = vadd.f32 %v1252, %v1427
        %v1429 = vpop.f32.mrb[0].mxu0
        %1430 = vmatprep.mubr.bf16.mxu0 0
        %1431 = vmatmul.mubr.bf16.gmra.mrb[0].mxu0 %v1227
        %v1432 = vpop.f32.mrb[0].mxu0
        %v1433 = vadd.f32 %v1252, %v1432
        %v1434 = vpop.f32.mrb[0].mxu0
        %v1435 = vpop.f32.mrb[0].mxu0
        %v1436 = vadd.f32 %v1252, %v1435
        %v1437 = vpop.f32.mrb[0].mxu0
        %1438 = vmatprep.mubr.bf16.mxu0 0
        %1439 = vmatmul.mubr.bf16.gmra.mrb[0].mxu0 %v1228
        %v1440 = vpop.f32.mrb[0].mxu0
        %v1441 = vadd.f32 %v1252, %v1440
        %v1442 = vpop.f32.mrb[0].mxu0
        %v1443 = vpop.f32.mrb[0].mxu0
        %v1444 = vadd.f32 %v1252, %v1443
        %v1445 = vpop.f32.mrb[0].mxu0
        %1446 = vmatprep.mubr.bf16.mxu0 0
        %1447 = vmatmul.mubr.bf16.gmra.mrb[0].mxu0 %v1229
        %v1448 = vpop.f32.mrb[0].mxu0
        %v1449 = vadd.f32 %v1252, %v1448
        %v1450 = vpop.f32.mrb[0].mxu0
        %v1451 = vpop.f32.mrb[0].mxu0
        %v1452 = vadd.f32 %v1252, %v1451
        %v1453 = vpop.f32.mrb[0].mxu0
        %1454 = vmatprep.mubr.bf16.mxu0 0
        %1455 = vmatmul.mubr.bf16.gmra.mrb[0].mxu0 %v1230
        %v1456 = vpop.f32.mrb[0].mxu0
        %v1457 = vadd.f32 %v1252, %v1456
        %v1458 = vpop.f32.mrb[0].mxu0
        %v1459 = vpop.f32.mrb[0].mxu0
        %v1460 = vadd.f32 %v1252, %v1459
        %v1461 = vpop.f32.mrb[0].mxu0
        %1462 = vdwg.mxu0
        %v1463 = vmax.f32 %v1337, 0.0
        %v1464 = vmax.f32 %v1340, 0.0
        %v1465 = vmax.f32 %v1345, 0.0
        %v1466 = vmax.f32 %v1348, 0.0
        %v1467 = vmax.f32 %v1353, 0.0
        %v1468 = vmax.f32 %v1356, 0.0
        %v1469 = vmax.f32 %v1361, 0.0
        %v1470 = vmax.f32 %v1364, 0.0
        %v1471 = vmax.f32 %v1369, 0.0
        %v1472 = vmax.f32 %v1372, 0.0
        %v1473 = vmax.f32 %v1377, 0.0
        %v1474 = vmax.f32 %v1380, 0.0
        %v1475 = vmax.f32 %v1385, 0.0
        %v1476 = vmax.f32 %v1388, 0.0
        %v1477 = vmax.f32 %v1393, 0.0
        %v1478 = vmax.f32 %v1396, 0.0
        %v1479 = vmax.f32 %v1401, 0.0
        %v1480 = vmax.f32 %v1404, 0.0
        %v1481 = vmax.f32 %v1409, 0.0
        %v1482 = vmax.f32 %v1412, 0.0
        %v1483 = vmax.f32 %v1417, 0.0
        %v1484 = vmax.f32 %v1420, 0.0
        %v1485 = vmax.f32 %v1425, 0.0
        %v1486 = vmax.f32 %v1428, 0.0
        %v1487 = vmax.f32 %v1433, 0.0
        %v1488 = vmax.f32 %v1436, 0.0
        %v1489 = vmax.f32 %v1441, 0.0
        %v1490 = vmax.f32 %v1444, 0.0
        %v1491 = vmax.f32 %v1449, 0.0
        %v1492 = vmax.f32 %v1452, 0.0
        %v1493 = vmax.f32 %v1457, 0.0
        %v1494 = vmax.f32 %v1460, 0.0
        %v1495 = vpack.c.bf16 %v1464, %v1463
        %v1496 = vpack.c.bf16 %v1466, %v1465
        %v1497 = vpack.c.bf16 %v1468, %v1467
        %v1498 = vpack.c.bf16 %v1470, %v1469
        %v1499 = vpack.c.bf16 %v1472, %v1471
        %v1500 = vpack.c.bf16 %v1474, %v1473
        %v1501 = vpack.c.bf16 %v1476, %v1475
        %v1502 = vpack.c.bf16 %v1478, %v1477
        %v1503 = vpack.c.bf16 %v1480, %v1479
        %v1504 = vpack.c.bf16 %v1482, %v1481
        %v1505 = vpack.c.bf16 %v1484, %v1483
        %v1506 = vpack.c.bf16 %v1486, %v1485
        %v1507 = vpack.c.bf16 %v1488, %v1487
        %v1508 = vpack.c.bf16 %v1490, %v1489
        %v1509 = vpack.c.bf16 %v1492, %v1491
        %v1510 = vpack.c.bf16 %v1494, %v1493
        %v1511 = vld [vmem:[#allocation2] sm:$0xf]
        %v1512 = vld [vmem:[#allocation2 + $0x4] sm:$0xf]
        %v1513 = vld [vmem:[#allocation2 + $0x8] sm:$0xf]
        %v1514 = vld [vmem:[#allocation2 + $0xc] sm:$0xf]
        %v1515 = vld [vmem:[#allocation2 + $0x10] sm:$0xf]
        %v1516 = vld [vmem:[#allocation2 + $0x14] sm:$0xf]
        %v1517 = vld [vmem:[#allocation2 + $0x18] sm:$0xf]
        %v1518 = vld [vmem:[#allocation2 + $0x1c] sm:$0xf]
        %v1519 = vld [vmem:[#allocation2 + $0x20] sm:$0xf]
        %v1520 = vld [vmem:[#allocation2 + $0x24] sm:$0xf]
        %v1521 = vld [vmem:[#allocation2 + $0x28] sm:$0xf]
        %v1522 = vld [vmem:[#allocation2 + $0x2c] sm:$0xf]
        %v1523 = vld [vmem:[#allocation2 + $0x30] sm:$0xf]
        %v1524 = vld [vmem:[#allocation2 + $0x34] sm:$0xf]
        %v1525 = vld [vmem:[#allocation2 + $0x38] sm:$0xf]
        %v1526 = vld [vmem:[#allocation2 + $0x3c] sm:$0xf]
        %v1527 = vld [vmem:[%s8] sm:$0xf]
        %v1528 = vld [vmem:[%s8 + $0x4] sm:$0xf]
        %v1529 = vld [vmem:[%s8 + $0x8] sm:$0xf]
        %v1530 = vld [vmem:[%s8 + $0xc] sm:$0xf]
        %v1531 = vld [vmem:[%s8 + $0x10] sm:$0xf]
        %v1532 = vld [vmem:[%s8 + $0x14] sm:$0xf]
        %v1533 = vld [vmem:[%s8 + $0x18] sm:$0xf]
        %v1534 = vld [vmem:[%s8 + $0x1c] sm:$0xf]
        %v1535 = vld [vmem:[%s8 + $0x20] sm:$0xf]
        %v1536 = vld [vmem:[%s8 + $0x24] sm:$0xf]
        %v1537 = vld [vmem:[%s8 + $0x28] sm:$0xf]
        %v1538 = vld [vmem:[%s8 + $0x2c] sm:$0xf]
        %v1539 = vld [vmem:[%s8 + $0x30] sm:$0xf]
        %v1540 = vld [vmem:[%s8 + $0x34] sm:$0xf]
        %v1541 = vld [vmem:[%s8 + $0x38] sm:$0xf]
        %v1542 = vld [vmem:[%s8 + $0x3c] sm:$0xf]
        %v1543 = vld [vmem:[%s8 + $0x40] sm:$0xf]
        %v1544 = vld [vmem:[%s8 + $0x44] sm:$0xf]
        %v1545 = vld [vmem:[%s8 + $0x48] sm:$0xf]
        %v1546 = vld [vmem:[%s8 + $0x4c] sm:$0xf]
        %v1547 = vld [vmem:[%s8 + $0x50] sm:$0xf]
        %v1548 = vld [vmem:[%s8 + $0x54] sm:$0xf]
        %v1549 = vld [vmem:[%s8 + $0x58] sm:$0xf]
        %v1550 = vld [vmem:[%s8 + $0x5c] sm:$0xf]
        %v1551 = vld [vmem:[%s8 + $0x60] sm:$0xf]
        %v1552 = vld [vmem:[%s8 + $0x64] sm:$0xf]
        %v1553 = vld [vmem:[%s8 + $0x68] sm:$0xf]
        %v1554 = vld [vmem:[%s8 + $0x6c] sm:$0xf]
        %v1555 = vld [vmem:[%s8 + $0x70] sm:$0xf]
        %v1556 = vld [vmem:[%s8 + $0x74] sm:$0xf]
        %v1557 = vld [vmem:[%s8 + $0x78] sm:$0xf]
        %v1558 = vld [vmem:[%s8 + $0x7c] sm:$0xf]
        %v1591 = vunpack.c.l.b16 %v1527
        %v1592 = vunpack.c.l.b16 %v1528
        %v1593 = vunpack.c.l.b16 %v1529
        %v1594 = vunpack.c.l.b16 %v1530
        %v1595 = vunpack.c.l.b16 %v1531
        %v1596 = vunpack.c.l.b16 %v1532
        %v1597 = vunpack.c.l.b16 %v1533
        %v1598 = vunpack.c.l.b16 %v1534
        %v1599 = vunpack.c.l.b16 %v1535
        %v1600 = vunpack.c.l.b16 %v1536
        %v1601 = vunpack.c.l.b16 %v1537
        %v1602 = vunpack.c.l.b16 %v1538
        %v1603 = vunpack.c.l.b16 %v1539
        %v1604 = vunpack.c.l.b16 %v1540
        %v1605 = vunpack.c.l.b16 %v1541
        %v1606 = vunpack.c.l.b16 %v1542
        %v1607 = vunpack.c.l.b16 %v1543
        %v1608 = vunpack.c.l.b16 %v1544
        %v1609 = vunpack.c.l.b16 %v1545
        %v1610 = vunpack.c.l.b16 %v1546
        %v1611 = vunpack.c.l.b16 %v1547
        %v1612 = vunpack.c.l.b16 %v1548
        %v1613 = vunpack.c.l.b16 %v1549
        %v1614 = vunpack.c.l.b16 %v1550
        %v1615 = vunpack.c.l.b16 %v1551
        %v1616 = vunpack.c.l.b16 %v1552
        %v1617 = vunpack.c.l.b16 %v1553
        %v1618 = vunpack.c.l.b16 %v1554
        %v1619 = vunpack.c.l.b16 %v1555
        %v1620 = vunpack.c.l.b16 %v1556
        %v1621 = vunpack.c.l.b16 %v1557
        %v1622 = vunpack.c.l.b16 %v1558
        %v1623 = vpack.c.b16 %v1592, %v1591
        %v1624 = vpack.c.b16 %v1594, %v1593
        %v1625 = vpack.c.b16 %v1596, %v1595
        %v1626 = vpack.c.b16 %v1598, %v1597
        %v1627 = vpack.c.b16 %v1600, %v1599
        %v1628 = vpack.c.b16 %v1602, %v1601
        %v1629 = vpack.c.b16 %v1604, %v1603
        %v1630 = vpack.c.b16 %v1606, %v1605
        %v1631 = vpack.c.b16 %v1608, %v1607
        %v1632 = vpack.c.b16 %v1610, %v1609
        %v1633 = vpack.c.b16 %v1612, %v1611
        %v1634 = vpack.c.b16 %v1614, %v1613
        %v1635 = vpack.c.b16 %v1616, %v1615
        %v1636 = vpack.c.b16 %v1618, %v1617
        %v1637 = vpack.c.b16 %v1620, %v1619
        %v1638 = vpack.c.b16 %v1622, %v1621
        %1655 = vmatprep.subr.bf16.mxu0 0
        %1656 = vmatpush1.bf16.msra.mxu0 %v1623
        %1657 = vmatprep.subr.bf16.mxu0 0
        %1658 = vmatpush1.bf16.msra.mxu0 %v1624
        %1659 = vmatprep.subr.bf16.mxu0 0
        %1660 = vmatpush1.bf16.msra.mxu0 %v1625
        %1661 = vmatprep.subr.bf16.mxu0 0
        %1662 = vmatpush1.bf16.msra.mxu0 %v1626
        %1663 = vmatprep.subr.bf16.mxu0 0
        %1664 = vmatpush1.bf16.msra.mxu0 %v1627
        %1665 = vmatprep.subr.bf16.mxu0 0
        %1666 = vmatpush1.bf16.msra.mxu0 %v1628
        %1667 = vmatprep.subr.bf16.mxu0 0
        %1668 = vmatpush1.bf16.msra.mxu0 %v1629
        %1669 = vmatprep.subr.bf16.mxu0 0
        %1670 = vmatpush1.bf16.msra.mxu0 %v1630
        %1671 = vmatprep.subr.bf16.mxu0 0
        %1672 = vmatpush1.bf16.msra.mxu0 %v1631
        %1673 = vmatprep.subr.bf16.mxu0 0
        %1674 = vmatpush1.bf16.msra.mxu0 %v1632
        %1675 = vmatprep.subr.bf16.mxu0 0
        %1676 = vmatpush1.bf16.msra.mxu0 %v1633
        %1677 = vmatprep.subr.bf16.mxu0 0
        %1678 = vmatpush1.bf16.msra.mxu0 %v1634
        %1679 = vmatprep.subr.bf16.mxu0 0
        %1680 = vmatpush1.bf16.msra.mxu0 %v1635
        %1681 = vmatprep.subr.bf16.mxu0 0
        %1682 = vmatpush1.bf16.msra.mxu0 %v1636
        %1683 = vmatprep.subr.bf16.mxu0 0
        %1684 = vmatpush1.bf16.msra.mxu0 %v1637
        %1685 = vmatprep.subr.bf16.mxu0 0
        %1686 = vmatpush1.bf16.msra.mxu0 %v1638
        %1687 = vmatprep.mubr.bf16.mxu0 %v856
        %1688 = vmatmul.mubr.bf16.gmra.mrb[0].mxu0 %v855
        %v1689 = vpop.f32.mrb[0].mxu0
        %v1690 = vadd.f32 0.0, %v1689
        %v1691 = vpop.f32.mrb[0].mxu0
        %v1692 = vpop.f32.mrb[0].mxu0
        %v1693 = vadd.f32 0.0, %v1692
        %v1694 = vpop.f32.mrb[0].mxu0
        %1695 = vmatprep.mubr.bf16.mxu0 %v858
        %1696 = vmatmul.mubr.bf16.gmra.mrb[0].mxu0 %v857
        %v1697 = vpop.f32.mrb[0].mxu0
        %v1698 = vadd.f32 0.0, %v1697
        %v1699 = vpop.f32.mrb[0].mxu0
        %v1700 = vpop.f32.mrb[0].mxu0
        %v1701 = vadd.f32 0.0, %v1700
        %v1702 = vpop.f32.mrb[0].mxu0
        %1703 = vmatprep.mubr.bf16.mxu0 %v860
        %1704 = vmatmul.mubr.bf16.gmra.mrb[0].mxu0 %v859
        %v1705 = vpop.f32.mrb[0].mxu0
        %v1706 = vadd.f32 0.0, %v1705
        %v1707 = vpop.f32.mrb[0].mxu0
        %v1708 = vpop.f32.mrb[0].mxu0
        %v1709 = vadd.f32 0.0, %v1708
        %v1710 = vpop.f32.mrb[0].mxu0
        %1711 = vmatprep.mubr.bf16.mxu0 %v862
        %1712 = vmatmul.mubr.bf16.gmra.mrb[0].mxu0 %v861
        %v1713 = vpop.f32.mrb[0].mxu0
        %v1714 = vadd.f32 0.0, %v1713
        %v1715 = vpop.f32.mrb[0].mxu0
        %v1716 = vpop.f32.mrb[0].mxu0
        %v1717 = vadd.f32 0.0, %v1716
        %v1718 = vpop.f32.mrb[0].mxu0
        %1719 = vmatprep.mubr.bf16.mxu0 %v864
        %1720 = vmatmul.mubr.bf16.gmra.mrb[0].mxu0 %v863
        %v1721 = vpop.f32.mrb[0].mxu0
        %v1722 = vadd.f32 0.0, %v1721
        %v1723 = vpop.f32.mrb[0].mxu0
        %v1724 = vpop.f32.mrb[0].mxu0
        %v1725 = vadd.f32 0.0, %v1724
        %v1726 = vpop.f32.mrb[0].mxu0
        %1727 = vmatprep.mubr.bf16.mxu0 %v866
        %1728 = vmatmul.mubr.bf16.gmra.mrb[0].mxu0 %v865
        %v1729 = vpop.f32.mrb[0].mxu0
        %v1730 = vadd.f32 0.0, %v1729
        %v1731 = vpop.f32.mrb[0].mxu0
        %v1732 = vpop.f32.mrb[0].mxu0
        %v1733 = vadd.f32 0.0, %v1732
        %v1734 = vpop.f32.mrb[0].mxu0
        %1735 = vmatprep.mubr.bf16.mxu0 %v868
        %1736 = vmatmul.mubr.bf16.gmra.mrb[0].mxu0 %v867
        %v1737 = vpop.f32.mrb[0].mxu0
        %v1738 = vadd.f32 0.0, %v1737
        %v1739 = vpop.f32.mrb[0].mxu0
        %v1740 = vpop.f32.mrb[0].mxu0
        %v1741 = vadd.f32 0.0, %v1740
        %v1742 = vpop.f32.mrb[0].mxu0
        %1743 = vmatprep.mubr.bf16.mxu0 %v870
        %1744 = vmatmul.mubr.bf16.gmra.mrb[0].mxu0 %v869
        %v1745 = vpop.f32.mrb[0].mxu0
        %v1746 = vadd.f32 0.0, %v1745
        %v1747 = vpop.f32.mrb[0].mxu0
        %v1748 = vpop.f32.mrb[0].mxu0
        %v1749 = vadd.f32 0.0, %v1748
        %v1750 = vpop.f32.mrb[0].mxu0
        %1751 = vmatprep.mubr.bf16.mxu0 %v872
        %1752 = vmatmul.mubr.bf16.gmra.mrb[0].mxu0 %v871
        %v1753 = vpop.f32.mrb[0].mxu0
        %v1754 = vadd.f32 0.0, %v1753
        %v1755 = vpop.f32.mrb[0].mxu0
        %v1756 = vpop.f32.mrb[0].mxu0
        %v1757 = vadd.f32 0.0, %v1756
        %v1758 = vpop.f32.mrb[0].mxu0
        %1759 = vmatprep.mubr.bf16.mxu0 %v874
        %1760 = vmatmul.mubr.bf16.gmra.mrb[0].mxu0 %v873
        %v1761 = vpop.f32.mrb[0].mxu0
        %v1762 = vadd.f32 0.0, %v1761
        %v1763 = vpop.f32.mrb[0].mxu0
        %v1764 = vpop.f32.mrb[0].mxu0
        %v1765 = vadd.f32 0.0, %v1764
        %v1766 = vpop.f32.mrb[0].mxu0
        %1767 = vmatprep.mubr.bf16.mxu0 %v876
        %1768 = vmatmul.mubr.bf16.gmra.mrb[0].mxu0 %v875
        %v1769 = vpop.f32.mrb[0].mxu0
        %v1770 = vadd.f32 0.0, %v1769
        %v1771 = vpop.f32.mrb[0].mxu0
        %v1772 = vpop.f32.mrb[0].mxu0
        %v1773 = vadd.f32 0.0, %v1772
        %v1774 = vpop.f32.mrb[0].mxu0
        %1775 = vmatprep.mubr.bf16.mxu0 %v878
        %1776 = vmatmul.mubr.bf16.gmra.mrb[0].mxu0 %v877
        %v1777 = vpop.f32.mrb[0].mxu0
        %v1778 = vadd.f32 0.0, %v1777
        %v1779 = vpop.f32.mrb[0].mxu0
        %v1780 = vpop.f32.mrb[0].mxu0
        %v1781 = vadd.f32 0.0, %v1780
        %v1782 = vpop.f32.mrb[0].mxu0
        %1783 = vmatprep.mubr.bf16.mxu0 %v880
        %1784 = vmatmul.mubr.bf16.gmra.mrb[0].mxu0 %v879
        %v1785 = vpop.f32.mrb[0].mxu0
        %v1786 = vadd.f32 0.0, %v1785
        %v1787 = vpop.f32.mrb[0].mxu0
        %v1788 = vpop.f32.mrb[0].mxu0
        %v1789 = vadd.f32 0.0, %v1788
        %v1790 = vpop.f32.mrb[0].mxu0
        %1791 = vmatprep.mubr.bf16.mxu0 %v882
        %1792 = vmatmul.mubr.bf16.gmra.mrb[0].mxu0 %v881
        %v1793 = vpop.f32.mrb[0].mxu0
        %v1794 = vadd.f32 0.0, %v1793
        %v1795 = vpop.f32.mrb[0].mxu0
        %v1796 = vpop.f32.mrb[0].mxu0
        %v1797 = vadd.f32 0.0, %v1796
        %v1798 = vpop.f32.mrb[0].mxu0
        %1799 = vmatprep.mubr.bf16.mxu0 %v884
        %1800 = vmatmul.mubr.bf16.gmra.mrb[0].mxu0 %v883
        %v1801 = vpop.f32.mrb[0].mxu0
        %v1802 = vadd.f32 0.0, %v1801
        %v1803 = vpop.f32.mrb[0].mxu0
        %v1804 = vpop.f32.mrb[0].mxu0
        %v1805 = vadd.f32 0.0, %v1804
        %v1806 = vpop.f32.mrb[0].mxu0
        %1807 = vmatprep.mubr.bf16.mxu0 %v886
        %1808 = vmatmul.mubr.bf16.gmra.mrb[0].mxu0 %v885
        %v1809 = vpop.f32.mrb[0].mxu0
        %v1810 = vadd.f32 0.0, %v1809
        %v1811 = vpop.f32.mrb[0].mxu0
        %v1812 = vpop.f32.mrb[0].mxu0
        %v1813 = vadd.f32 0.0, %v1812
        %v1814 = vpop.f32.mrb[0].mxu0
        %1815 = vdwg.mxu0
        %v1832 = vunpack.c.l.b16 %v1511
        %v1833 = vunpack.c.l.b16 %v1512
        %v1834 = vunpack.c.l.b16 %v1513
        %v1835 = vunpack.c.l.b16 %v1514
        %v1836 = vunpack.c.l.b16 %v1515
        %v1837 = vunpack.c.l.b16 %v1516
        %v1838 = vunpack.c.l.b16 %v1517
        %v1839 = vunpack.c.l.b16 %v1518
        %v1840 = vunpack.c.l.b16 %v1519
        %v1841 = vunpack.c.l.b16 %v1520
        %v1842 = vunpack.c.l.b16 %v1521
        %v1843 = vunpack.c.l.b16 %v1522
        %v1844 = vunpack.c.l.b16 %v1523
        %v1845 = vunpack.c.l.b16 %v1524
        %v1846 = vunpack.c.l.b16 %v1525
        %v1847 = vunpack.c.l.b16 %v1526
        %v1848 = vpack.c.b16 %v1833, %v1832
        %v1849 = vpack.c.b16 %v1835, %v1834
        %v1850 = vpack.c.b16 %v1837, %v1836
        %v1851 = vpack.c.b16 %v1839, %v1838
        %v1852 = vpack.c.b16 %v1841, %v1840
        %v1853 = vpack.c.b16 %v1843, %v1842
        %v1854 = vpack.c.b16 %v1845, %v1844
        %v1855 = vpack.c.b16 %v1847, %v1846
        %1864 = vmatprep.subr.bf16.mxu0 0
        %1865 = vmatpush1.bf16.msra.mxu0 %v1848
        %1866 = vmatprep.subr.bf16.mxu0 0
        %1867 = vmatpush1.bf16.msra.mxu0 %v1849
        %1868 = vmatprep.subr.bf16.mxu0 0
        %1869 = vmatpush1.bf16.msra.mxu0 %v1850
        %1870 = vmatprep.subr.bf16.mxu0 0
        %1871 = vmatpush1.bf16.msra.mxu0 %v1851
        %1872 = vmatprep.subr.bf16.mxu0 0
        %1873 = vmatpush1.bf16.msra.mxu0 %v1852
        %1874 = vmatprep.subr.bf16.mxu0 0
        %1875 = vmatpush1.bf16.msra.mxu0 %v1853
        %1876 = vmatprep.subr.bf16.mxu0 0
        %1877 = vmatpush1.bf16.msra.mxu0 %v1854
        %1878 = vmatprep.subr.bf16.mxu0 0
        %1879 = vmatpush1.bf16.msra.mxu0 %v1855
        %1880 = vmatprep.subr.bf16.mxu0 0
        %1881 = vmatpush1.bf16.msra.mxu0 0
        %1882 = vmatprep.subr.bf16.mxu0 0
        %1883 = vmatpush1.bf16.msra.mxu0 0
        %1884 = vmatprep.subr.bf16.mxu0 0
        %1885 = vmatpush1.bf16.msra.mxu0 0
        %1886 = vmatprep.subr.bf16.mxu0 0
        %1887 = vmatpush1.bf16.msra.mxu0 0
        %1888 = vmatprep.subr.bf16.mxu0 0
        %1889 = vmatpush1.bf16.msra.mxu0 0
        %1890 = vmatprep.subr.bf16.mxu0 0
        %1891 = vmatpush1.bf16.msra.mxu0 0
        %1892 = vmatprep.subr.bf16.mxu0 0
        %1893 = vmatpush1.bf16.msra.mxu0 0
        %1894 = vmatprep.subr.bf16.mxu0 0
        %1895 = vmatpush1.bf16.msra.mxu0 0
        %1896 = vmatprep.mubr.bf16.mxu0 0
        %1897 = vmatmul.mubr.bf16.gmra.mrb[0].mxu0 %v1495
        %v1898 = vpop.f32.mrb[0].mxu0
        %v1899 = vadd.f32 %v1690, %v1898
        %v1900 = vpop.f32.mrb[0].mxu0
        %v1901 = vpop.f32.mrb[0].mxu0
        %v1902 = vadd.f32 %v1693, %v1901
        %v1903 = vpop.f32.mrb[0].mxu0
        %1904 = vmatprep.mubr.bf16.mxu0 0
        %1905 = vmatmul.mubr.bf16.gmra.mrb[0].mxu0 %v1496
        %v1906 = vpop.f32.mrb[0].mxu0
        %v1907 = vadd.f32 %v1698, %v1906
        %v1908 = vpop.f32.mrb[0].mxu0
        %v1909 = vpop.f32.mrb[0].mxu0
        %v1910 = vadd.f32 %v1701, %v1909
        %v1911 = vpop.f32.mrb[0].mxu0
        %1912 = vmatprep.mubr.bf16.mxu0 0
        %1913 = vmatmul.mubr.bf16.gmra.mrb[0].mxu0 %v1497
        %v1914 = vpop.f32.mrb[0].mxu0
        %v1915 = vadd.f32 %v1706, %v1914
        %v1916 = vpop.f32.mrb[0].mxu0
        %v1917 = vpop.f32.mrb[0].mxu0
        %v1918 = vadd.f32 %v1709, %v1917
        %v1919 = vpop.f32.mrb[0].mxu0
        %1920 = vmatprep.mubr.bf16.mxu0 0
        %1921 = vmatmul.mubr.bf16.gmra.mrb[0].mxu0 %v1498
        %v1922 = vpop.f32.mrb[0].mxu0
        %v1923 = vadd.f32 %v1714, %v1922
        %v1924 = vpop.f32.mrb[0].mxu0
        %v1925 = vpop.f32.mrb[0].mxu0
        %v1926 = vadd.f32 %v1717, %v1925
        %v1927 = vpop.f32.mrb[0].mxu0
        %1928 = vmatprep.mubr.bf16.mxu0 0
        %1929 = vmatmul.mubr.bf16.gmra.mrb[0].mxu0 %v1499
        %v1930 = vpop.f32.mrb[0].mxu0
        %v1931 = vadd.f32 %v1722, %v1930
        %v1932 = vpop.f32.mrb[0].mxu0
        %v1933 = vpop.f32.mrb[0].mxu0
        %v1934 = vadd.f32 %v1725, %v1933
        %v1935 = vpop.f32.mrb[0].mxu0
        %1936 = vmatprep.mubr.bf16.mxu0 0
        %1937 = vmatmul.mubr.bf16.gmra.mrb[0].mxu0 %v1500
        %v1938 = vpop.f32.mrb[0].mxu0
        %v1939 = vadd.f32 %v1730, %v1938
        %v1940 = vpop.f32.mrb[0].mxu0
        %v1941 = vpop.f32.mrb[0].mxu0
        %v1942 = vadd.f32 %v1733, %v1941
        %v1943 = vpop.f32.mrb[0].mxu0
        %1944 = vmatprep.mubr.bf16.mxu0 0
        %1945 = vmatmul.mubr.bf16.gmra.mrb[0].mxu0 %v1501
        %v1946 = vpop.f32.mrb[0].mxu0
        %v1947 = vadd.f32 %v1738, %v1946
        %v1948 = vpop.f32.mrb[0].mxu0
        %v1949 = vpop.f32.mrb[0].mxu0
        %v1950 = vadd.f32 %v1741, %v1949
        %v1951 = vpop.f32.mrb[0].mxu0
        %1952 = vmatprep.mubr.bf16.mxu0 0
        %1953 = vmatmul.mubr.bf16.gmra.mrb[0].mxu0 %v1502
        %v1954 = vpop.f32.mrb[0].mxu0
        %v1955 = vadd.f32 %v1746, %v1954
        %v1956 = vpop.f32.mrb[0].mxu0
        %v1957 = vpop.f32.mrb[0].mxu0
        %v1958 = vadd.f32 %v1749, %v1957
        %v1959 = vpop.f32.mrb[0].mxu0
        %1960 = vmatprep.mubr.bf16.mxu0 0
        %1961 = vmatmul.mubr.bf16.gmra.mrb[0].mxu0 %v1503
        %v1962 = vpop.f32.mrb[0].mxu0
        %v1963 = vadd.f32 %v1754, %v1962
        %v1964 = vpop.f32.mrb[0].mxu0
        %v1965 = vpop.f32.mrb[0].mxu0
        %v1966 = vadd.f32 %v1757, %v1965
        %v1967 = vpop.f32.mrb[0].mxu0
        %1968 = vmatprep.mubr.bf16.mxu0 0
        %1969 = vmatmul.mubr.bf16.gmra.mrb[0].mxu0 %v1504
        %v1970 = vpop.f32.mrb[0].mxu0
        %v1971 = vadd.f32 %v1762, %v1970
        %v1972 = vpop.f32.mrb[0].mxu0
        %v1973 = vpop.f32.mrb[0].mxu0
        %v1974 = vadd.f32 %v1765, %v1973
        %v1975 = vpop.f32.mrb[0].mxu0
        %1976 = vmatprep.mubr.bf16.mxu0 0
        %1977 = vmatmul.mubr.bf16.gmra.mrb[0].mxu0 %v1505
        %v1978 = vpop.f32.mrb[0].mxu0
        %v1979 = vadd.f32 %v1770, %v1978
        %v1980 = vpop.f32.mrb[0].mxu0
        %v1981 = vpop.f32.mrb[0].mxu0
        %v1982 = vadd.f32 %v1773, %v1981
        %v1983 = vpop.f32.mrb[0].mxu0
        %1984 = vmatprep.mubr.bf16.mxu0 0
        %1985 = vmatmul.mubr.bf16.gmra.mrb[0].mxu0 %v1506
        %v1986 = vpop.f32.mrb[0].mxu0
        %v1987 = vadd.f32 %v1778, %v1986
        %v1988 = vpop.f32.mrb[0].mxu0
        %v1989 = vpop.f32.mrb[0].mxu0
        %v1990 = vadd.f32 %v1781, %v1989
        %v1991 = vpop.f32.mrb[0].mxu0
        %1992 = vmatprep.mubr.bf16.mxu0 0
        %1993 = vmatmul.mubr.bf16.gmra.mrb[0].mxu0 %v1507
        %v1994 = vpop.f32.mrb[0].mxu0
        %v1995 = vadd.f32 %v1786, %v1994
        %v1996 = vpop.f32.mrb[0].mxu0
        %v1997 = vpop.f32.mrb[0].mxu0
        %v1998 = vadd.f32 %v1789, %v1997
        %v1999 = vpop.f32.mrb[0].mxu0
        %2000 = vmatprep.mubr.bf16.mxu0 0
        %2001 = vmatmul.mubr.bf16.gmra.mrb[0].mxu0 %v1508
        %v2002 = vpop.f32.mrb[0].mxu0
        %v2003 = vadd.f32 %v1794, %v2002
        %v2004 = vpop.f32.mrb[0].mxu0
        %v2005 = vpop.f32.mrb[0].mxu0
        %v2006 = vadd.f32 %v1797, %v2005
        %v2007 = vpop.f32.mrb[0].mxu0
        %2008 = vmatprep.mubr.bf16.mxu0 0
        %2009 = vmatmul.mubr.bf16.gmra.mrb[0].mxu0 %v1509
        %v2010 = vpop.f32.mrb[0].mxu0
        %v2011 = vadd.f32 %v1802, %v2010
        %v2012 = vpop.f32.mrb[0].mxu0
        %v2013 = vpop.f32.mrb[0].mxu0
        %v2014 = vadd.f32 %v1805, %v2013
        %v2015 = vpop.f32.mrb[0].mxu0
        %2016 = vmatprep.mubr.bf16.mxu0 0
        %2017 = vmatmul.mubr.bf16.gmra.mrb[0].mxu0 %v1510
        %v2018 = vpop.f32.mrb[0].mxu0
        %v2019 = vadd.f32 %v1810, %v2018
        %v2020 = vpop.f32.mrb[0].mxu0
        %v2021 = vpop.f32.mrb[0].mxu0
        %v2022 = vadd.f32 %v1813, %v2021
        %v2023 = vpop.f32.mrb[0].mxu0
        %2024 = vdwg.mxu0
        %v2025 = vld [vmem:[%s9] sm:$0x1]
        %v2027 = vlaneseq
        %v2028 = vshrl.u32 %v2027, 7
        %v2029 = vsub.s32 0, %v2028
        %v2030 = vrot.slane %v2025, %v2029
        %v2032 = vadd.f32 %v1899, %v2030
        %v2033 = vadd.f32 %v1902, %v2030
        %v2034 = vadd.f32 %v1907, %v2030
        %v2035 = vadd.f32 %v1910, %v2030
        %v2036 = vadd.f32 %v1915, %v2030
        %v2037 = vadd.f32 %v1918, %v2030
        %v2038 = vadd.f32 %v1923, %v2030
        %v2039 = vadd.f32 %v1926, %v2030
        %v2040 = vadd.f32 %v1931, %v2030
        %v2041 = vadd.f32 %v1934, %v2030
        %v2042 = vadd.f32 %v1939, %v2030
        %v2043 = vadd.f32 %v1942, %v2030
        %v2044 = vadd.f32 %v1947, %v2030
        %v2045 = vadd.f32 %v1950, %v2030
        %v2046 = vadd.f32 %v1955, %v2030
        %v2047 = vadd.f32 %v1958, %v2030
        %v2048 = vadd.f32 %v1963, %v2030
        %v2049 = vadd.f32 %v1966, %v2030
        %v2050 = vadd.f32 %v1971, %v2030
        %v2051 = vadd.f32 %v1974, %v2030
        %v2052 = vadd.f32 %v1979, %v2030
        %v2053 = vadd.f32 %v1982, %v2030
        %v2054 = vadd.f32 %v1987, %v2030
        %v2055 = vadd.f32 %v1990, %v2030
        %v2056 = vadd.f32 %v1995, %v2030
        %v2057 = vadd.f32 %v1998, %v2030
        %v2058 = vadd.f32 %v2003, %v2030
        %v2059 = vadd.f32 %v2006, %v2030
        %v2060 = vadd.f32 %v2011, %v2030
        %v2061 = vadd.f32 %v2014, %v2030
        %v2062 = vadd.f32 %v2019, %v2030
        %v2063 = vadd.f32 %v2022, %v2030
        %2064 = vst [vmem:[%s368] sm:$0xff] %v2032
        %2065 = vst [vmem:[%s368 + $0x8] sm:$0xff] %v2033
        %2066 = vst [vmem:[%s368 + $0x10] sm:$0xff] %v2034
        %2067 = vst [vmem:[%s368 + $0x18] sm:$0xff] %v2035
        %2068 = vst [vmem:[%s368 + $0x20] sm:$0xff] %v2036
        %2069 = vst [vmem:[%s368 + $0x28] sm:$0xff] %v2037
        %2070 = vst [vmem:[%s368 + $0x30] sm:$0xff] %v2038
        %2071 = vst [vmem:[%s368 + $0x38] sm:$0xff] %v2039
        %2072 = vst [vmem:[%s368 + $0x40] sm:$0xff] %v2040
        %2073 = vst [vmem:[%s368 + $0x48] sm:$0xff] %v2041
        %2074 = vst [vmem:[%s368 + $0x50] sm:$0xff] %v2042
        %2075 = vst [vmem:[%s368 + $0x58] sm:$0xff] %v2043
        %2076 = vst [vmem:[%s368 + $0x60] sm:$0xff] %v2044
        %2077 = vst [vmem:[%s368 + $0x68] sm:$0xff] %v2045
        %2078 = vst [vmem:[%s368 + $0x70] sm:$0xff] %v2046
        %2079 = vst [vmem:[%s368 + $0x78] sm:$0xff] %v2047
        %2080 = vst [vmem:[%s368 + $0x80] sm:$0xff] %v2048
        %2081 = vst [vmem:[%s368 + $0x88] sm:$0xff] %v2049
        %2082 = vst [vmem:[%s368 + $0x90] sm:$0xff] %v2050
        %2083 = vst [vmem:[%s368 + $0x98] sm:$0xff] %v2051
        %2084 = vst [vmem:[%s368 + $0xa0] sm:$0xff] %v2052
        %2085 = vst [vmem:[%s368 + $0xa8] sm:$0xff] %v2053
        %2086 = vst [vmem:[%s368 + $0xb0] sm:$0xff] %v2054
        %2087 = vst [vmem:[%s368 + $0xb8] sm:$0xff] %v2055
        %2088 = vst [vmem:[%s368 + $0xc0] sm:$0xff] %v2056
        %2089 = vst [vmem:[%s368 + $0xc8] sm:$0xff] %v2057
        %2090 = vst [vmem:[%s368 + $0xd0] sm:$0xff] %v2058
        %2091 = vst [vmem:[%s368 + $0xd8] sm:$0xff] %v2059
        %2092 = vst [vmem:[%s368 + $0xe0] sm:$0xff] %v2060
        %2093 = vst [vmem:[%s368 + $0xe8] sm:$0xff] %v2061
        %2094 = vst [vmem:[%s368 + $0xf0] sm:$0xff] %v2062
        %2095 = vst [vmem:[%s368 + $0xf8] sm:$0xff] %v2063
        %s2096 = sand.u32 %s248, 1
        %s2097 = scalar_lea.sflag [#allocation4], %s2096
        %s2098 = sand.u32 %s248, 1
        %s2099 = smul.addr %s2098, 256
        %s2100 = scalar_lea.vmem [#allocation5], %s2099
        // Predicated region
        $region65: #{tpu_custom_call.1} parent=59 // pred_check
          %p2101 = pneg %p258
        $region66: #{tpu_custom_call.1} parent=59 // pred_check_branch
          %2103 = sbr.rel (%p2101) target = $region68
        $region67: #{tpu_custom_call.1} parent=59 // pred_region
          %s2104 = smul.u32 32, %s25
          %s2106 = ssub.s32 4096, 4096
          %2107 = vsyncadd %s2097, %s2106
          %s2108 = smul.addr %s2104, 128
          %s2109 = scalar_lea.hbm %s10, %s2108
          %s2110 = sshll.u32 %s2100, 4
          %s2111 = int_to_ptr.vmem [resolvable:$true] %s2110
          %2116 = dma.vmem_to_hbm [thread:$0]  %s2111, 4096, %s2109, %s2097, 128, 128, 8
        $region68: #{tpu_custom_call.1} parent=59 // pred_fallthru
          _
      $region60: #{tpu_custom_call.1} parent=5 // pred_fallthru
        _
      %p2117 = scmp.le.s32.totalorder 2, %s20
      // Predicated region
      $region69: #{tpu_custom_call.1} parent=5 // pred_check
        %p2118 = pneg %p2117
      $region70: #{tpu_custom_call.1} parent=5 // pred_check_branch
        %2120 = sbr.rel (%p2118) target = $region72
      $region71: #{tpu_custom_call.1} parent=5 // pred_region
        %s2121 = ssub.s32 %s20, 2
        // Predicated region
        $region73: #{tpu_custom_call.1} parent=71 // pred_check
          %p2122 = pneg %p264
        $region74: #{tpu_custom_call.1} parent=71 // pred_check_branch
          %2124 = sbr.rel (%p2122) target = $region76
        $region75: #{tpu_custom_call.1} parent=71 // pred_region
          %s2125 = sand.u32 %s249, 1
          %s2126 = scalar_lea.sflag [#allocation4], %s2125
          %s2127 = sand.u32 %s249, 1
          %s2128 = smul.addr %s2127, 256
          %s2129 = scalar_lea.vmem [#allocation5], %s2128
          %2130 = dma.done %s2126, 4096
        $region76: #{tpu_custom_call.1} parent=71 // pred_fallthru
          _
      $region72: #{tpu_custom_call.1} parent=5 // pred_fallthru
        _
    $region6: #{tpu_custom_call.1} parent=1 // loop_footer
      %s24 = sadd.s32 1, %s20
    $region7: #{tpu_custom_call.1} parent=1 // loop_footer_branch
      %19 = sbr.rel target = $region3
    $region8: #{tpu_custom_call.1} parent=1 // loop_exit
      _
    %2131 = vsyncpa [#allocation3], 1
    %s2132 = scalar_lea.sflag [#allocation3], 1
    %2133 = vsyncpa %s2132, 1
    %2134 = vsyncpa [#allocation4], 1
    %s2135 = scalar_lea.sflag [#allocation4], 1
    %2136 = vsyncpa %s2135, 1

</llo_original>
